<compile_context>
chip_gen: v7x
topology: tpu7x:2x2x1
jax: 0.10.0
libtpu: 0.0.40
codegen_flags: <defaults>
</compile_context>

<pallas_src>
import jax
import jax.numpy as jnp
import numpy as np
from jax.experimental import pallas as pl
from jax.experimental.pallas import tpu as pltpu

BN_EPS = 1e-5


def _pick_row_tile(rows, wo, target_rows=2048):
    """Largest divisor TR of `rows` with TR*wo <= target_rows and TR*wo % 8 == 0."""
    limit = max(1, min(rows, target_rows // max(wo, 1)))
    for tr in range(limit, 0, -1):
        if rows % tr == 0 and (tr * wo) % 8 == 0:
            return tr
    return rows  # fall back to the full extent (block == full dim is always legal)


def _conv_stats_kernel(x1_ref, x2_ref, w1_ref, w2_ref, y_ref, sum_ref, ssq_ref):
    """relu + both stride-2 1x1 convs + per-channel sum/sumsq accumulation.

    x1_ref/x2_ref: (TR, Wo, 2*C_in) even-h / odd-h rows; both w-phases packed
                   into the lane dim (the w-phase selection lives in the zero
                   rows of w1_ref / w2_ref).
    w1_ref/w2_ref: (2*C_in, C_half) zero-padded 1x1 conv weights.
    y_ref:         (2, TM, C_half)  pre-BN conv outputs (branch-major).
    sum_ref/ssq_ref: (2, C_half)    VMEM-resident accumulators (constant index map).
    """

    @pl.when(pl.program_id(0) == 0)
    def _init():
        sum_ref[...] = jnp.zeros_like(sum_ref)
        ssq_ref[...] = jnp.zeros_like(ssq_ref)

    tr, wo, c2 = x1_ref.shape
    tm = tr * wo

    x1 = jnp.maximum(x1_ref[...], 0.0).reshape(tm, c2)
    x2 = jnp.maximum(x2_ref[...], 0.0).reshape(tm, c2)

    # 1x1 stride-2 convs == GEMMs on the MXU; the zero weight rows implement
    # the w-direction stride-2 tap selection for free.
    y1 = jnp.dot(x1, w1_ref[...], preferred_element_type=jnp.float32)
    y2 = jnp.dot(x2, w2_ref[...], preferred_element_type=jnp.float32)

    y_ref[0] = y1
    y_ref[1] = y2

    # Per-channel partial sums for the BN batch statistics.
    sum_ref[...] += jnp.concatenate(
        [jnp.sum(y1, axis=0, keepdims=True),
         jnp.sum(y2, axis=0, keepdims=True)], axis=0)
    ssq_ref[...] += jnp.concatenate(
        [jnp.sum(y1 * y1, axis=0, keepdims=True),
         jnp.sum(y2 * y2, axis=0, keepdims=True)], axis=0)


def _bn_apply_kernel(y_ref, scale_ref, shift_ref, o_ref):
    """BatchNorm folded into a single FMA: out = y * scale + shift."""
    o_ref[...] = y_ref[...] * scale_ref[...] + shift_ref[...]


def factorized_reduce(x_nchw, w1, w2, gamma, beta):
    """x_nchw: (N, C_in, H, W) f32.  w1/w2: (C_in, C_out//2) GEMM-form 1x1 conv
    weights.  gamma/beta: (C_out,) BN affine params.  Returns NCHW output."""
    N, C_in, H, W = x_nchw.shape
    assert H % 2 == 0 and W % 2 == 0, "FactorizedReduce requires even H and W"
    C_half = w1.shape[1]
    C_out = 2 * C_half
    Ho, Wo = H // 2, W // 2
    R = N * Ho                 # row blocks (one row = Wo output pixels)
    M = R * Wo                 # total output pixels per channel
    C2 = 2 * C_in              # both w-phases packed into the lane dim

    # One NCHW->NHWC transpose; the reshape is free (pure metadata).
    x_r = jnp.transpose(x_nchw, (0, 2, 3, 1)).reshape(R, 2, Wo, C2)

    # Zero-padded weights: lanes [0,C_in) are even-w taps, [C_in,2C_in) odd-w.
    w1_ext = jnp.concatenate([w1, jnp.zeros_like(w1)], axis=0)   # conv_1: even w
    w2_ext = jnp.concatenate([jnp.zeros_like(w2), w2], axis=0)   # conv_2: odd w

    TR = _pick_row_tile(R, Wo)
    TM = TR * Wo
    grid1 = (R // TR,)

    flops1 = 2 * 2 * M * C2 * C_half + 8 * M * C_half
    bytes1 = 4 * (2 * M * C2 + 2 * M * C_half + 2 * C2 * C_half + 4 * C_half)

    y, ssum, ssq = pl.pallas_call(
        _conv_stats_kernel,
        out_shape=(
            jax.ShapeDtypeStruct((2, M, C_half), jnp.float32),   # pre-BN conv out
            jax.ShapeDtypeStruct((2, C_half), jnp.float32),      # per-channel sum
            jax.ShapeDtypeStruct((2, C_half), jnp.float32),      # per-channel sumsq
        ),
        grid=grid1,
        in_specs=[
            # even-h rows (conv_1 path): h-phase selected by the DMA
            pl.BlockSpec((TR, None, Wo, C2), lambda i: (i, 0, 0, 0)),
            # odd-h rows (conv_2 path)
            pl.BlockSpec((TR, None, Wo, C2), lambda i: (i, 1, 0, 0)),
            pl.BlockSpec((C2, C_half), lambda i: (0, 0)),
            pl.BlockSpec((C2, C_half), lambda i: (0, 0)),
        ],
        out_specs=(
            pl.BlockSpec((2, TM, C_half), lambda i: (0, i, 0)),
            pl.BlockSpec((2, C_half), lambda i: (0, 0)),         # accumulator
            pl.BlockSpec((2, C_half), lambda i: (0, 0)),         # accumulator
        ),
        compiler_params=pltpu.CompilerParams(dimension_semantics=("arbitrary",)),
        cost_estimate=pl.CostEstimate(
            flops=flops1, transcendentals=0, bytes_accessed=bytes1),
    )(x_r, x_r, w1_ext, w2_ext)

    # Fold BN (training-mode batch stats, biased variance) into one FMA.
    mean = ssum / M
    var = ssq / M - mean * mean
    gamma2 = gamma.astype(jnp.float32).reshape(2, C_half)
    beta2 = beta.astype(jnp.float32).reshape(2, C_half)
    scale = gamma2 * jax.lax.rsqrt(var + BN_EPS)
    shift = beta2 - mean * scale
    scale3 = scale.reshape(2, 1, C_half)
    shift3 = shift.reshape(2, 1, C_half)

    grid2 = (M // TM,)
    flops2 = 2 * 2 * M * C_half
    bytes2 = 4 * (4 * M * C_half + 4 * C_half)

    y_norm = pl.pallas_call(
        _bn_apply_kernel,
        out_shape=jax.ShapeDtypeStruct((2, M, C_half), jnp.float32),
        grid=grid2,
        in_specs=[
            pl.BlockSpec((2, TM, C_half), lambda i: (0, i, 0)),
            pl.BlockSpec((2, 1, C_half), lambda i: (0, 0, 0)),
            pl.BlockSpec((2, 1, C_half), lambda i: (0, 0, 0)),
        ],
        out_specs=pl.BlockSpec((2, TM, C_half), lambda i: (0, i, 0)),
        input_output_aliases={0: 0},   # normalize in place
        compiler_params=pltpu.CompilerParams(dimension_semantics=("parallel",)),
        cost_estimate=pl.CostEstimate(
            flops=flops2, transcendentals=0, bytes_accessed=bytes2),
    )(y, scale3, shift3)

    # (2, M, C_half) == (2, N, Ho, Wo, C_half)  ->  NCHW with branch-major channels
    out = y_norm.reshape(2, N, Ho, Wo, C_half)
    out = jnp.transpose(out, (1, 0, 4, 2, 3)).reshape(N, C_out, Ho, Wo)
    return out


def _reference(x_nchw, w1, w2, gamma, beta):
    """Pure-JAX reference of the same forward pass (two-pass BN)."""
    x = jnp.maximum(x_nchw, 0.0)
    x1 = jnp.transpose(x[:, :, 0::2, 0::2], (0, 2, 3, 1))
    x2 = jnp.transpose(x[:, :, 1::2, 1::2], (0, 2, 3, 1))
    y1 = jnp.einsum("nhwc,cd->nhwd", x1, w1)
    y2 = jnp.einsum("nhwc,cd->nhwd", x2, w2)
    y = jnp.concatenate([y1, y2], axis=-1)
    mean = jnp.mean(y, axis=(0, 1, 2), keepdims=True)
    var = jnp.mean((y - mean) ** 2, axis=(0, 1, 2), keepdims=True)
    y = (y - mean) * jax.lax.rsqrt(var + BN_EPS) * gamma + beta
    return jnp.transpose(y, (0, 3, 1, 2))


if __name__ == "__main__":
    key = jax.random.PRNGKey(0)
    kx, k1, k2, kg, kb = jax.random.split(key, 5)

    N, C_in, H, W = 2, 4, 16, 16
    C_out = 4                      # ch_out % 2 == 0
    C_half = C_out // 2

    x = jax.random.normal(kx, (N, C_in, H, W), dtype=jnp.float32)

    # conv weights: PyTorch shape is (C_half, C_in, 1, 1); stored transposed
    # as the (C_in, C_half) GEMM form.
    w1 = jax.random.normal(k1, (C_in, C_half), dtype=jnp.float32) * 0.1
    w2 = jax.random.normal(k2, (C_in, C_half), dtype=jnp.float32) * 0.1

    # BatchNorm affine params (non-trivial to exercise the scale/shift path).
    gamma = 1.0 + 0.1 * jax.random.normal(kg, (C_out,), dtype=jnp.float32)
    beta = 0.1 * jax.random.normal(kb, (C_out,), dtype=jnp.float32)

    fr = jax.jit(factorized_reduce)
    out = jax.block_until_ready(fr(x, w1, w2, gamma, beta))

    ref = jax.block_until_ready(_reference(x, w1, w2, gamma, beta))
    assert out.shape == (N, C_out, H // 2, W // 2)
    np.testing.assert_allclose(np.asarray(out), np.asarray(ref), rtol=1e-4, atol=1e-4)

    print("KERNEL_OK")
</pallas_src>

<mosaic_0001>
module attributes {stable_mosaic.version = 11 : i64} {
  func.func @_conv_stats_kernel(%arg0: i32, %arg1: memref<16x1x8x8xf32, #tpu.memory_space<vmem>>, %arg2: memref<16x1x8x8xf32, #tpu.memory_space<vmem>>, %arg3: memref<8x2xf32, #tpu.memory_space<vmem>>, %arg4: memref<8x2xf32, #tpu.memory_space<vmem>>, %arg5: memref<2x128x2xf32, #tpu.memory_space<vmem>>, %arg6: memref<2x2xf32, #tpu.memory_space<vmem>>, %arg7: memref<2x2xf32, #tpu.memory_space<vmem>>) attributes {dimension_semantics = [#tpu.dimension_semantics<arbitrary>], iteration_bounds = array<i64: 1>, scalar_prefetch = 0 : i64, scratch_operands = 0 : i64, tpu.core_type = #tpu.core_type<tc>, window_params = [{transform_indices = @transform_0, window_bounds = array<i64: 16, 1, 8, 8>}, {transform_indices = @transform_1, window_bounds = array<i64: 16, 1, 8, 8>}, {pipeline_mode = #tpu.pipeline_mode<synchronous>, transform_indices = @transform_2, window_bounds = array<i64: 8, 2>}, {pipeline_mode = #tpu.pipeline_mode<synchronous>, transform_indices = @transform_3, window_bounds = array<i64: 8, 2>}, {transform_indices = @transform_4, window_bounds = array<i64: 2, 128, 2>}, {pipeline_mode = #tpu.pipeline_mode<synchronous>, transform_indices = @transform_5, window_bounds = array<i64: 2, 2>}, {pipeline_mode = #tpu.pipeline_mode<synchronous>, transform_indices = @transform_6, window_bounds = array<i64: 2, 2>}]} {
    %c0_i32 = arith.constant 0 : i32
    %0 = arith.cmpi eq, %arg0, %c0_i32 : i32
    %1 = arith.extui %0 : i1 to i32
    %c0_i32_0 = arith.constant 0 : i32
    %2 = arith.cmpi ne, %1, %c0_i32_0 : i32
    scf.if %2 {
      %cst_32 = arith.constant 0.000000e+00 : f32
      %41 = vector.broadcast %cst_32 : f32 to vector<2x2xf32>
      %c0_33 = arith.constant 0 : index
      %c0_34 = arith.constant 0 : index
      %42 = vector.load %arg6[%c0_33, %c0_34] : memref<2x2xf32, #tpu.memory_space<vmem>>, vector<2x2xf32>
      tpu.vector_store %arg6[%c0_33, %c0_34], %41 {strides = array<i32>} : memref<2x2xf32, #tpu.memory_space<vmem>>, vector<2x2xf32>,
      %cst_35 = arith.constant 0.000000e+00 : f32
      %43 = vector.broadcast %cst_35 : f32 to vector<2x2xf32>
      %c0_36 = arith.constant 0 : index
      %c0_37 = arith.constant 0 : index
      %44 = vector.load %arg7[%c0_36, %c0_37] : memref<2x2xf32, #tpu.memory_space<vmem>>, vector<2x2xf32>
      tpu.vector_store %arg7[%c0_36, %c0_37], %43 {strides = array<i32>} : memref<2x2xf32, #tpu.memory_space<vmem>>, vector<2x2xf32>,
    } else {
    }
    %c0 = arith.constant 0 : index
    %c0_1 = arith.constant 0 : index
    %c0_2 = arith.constant 0 : index
    %c0_3 = arith.constant 0 : index
    %3 = vector.load %arg1[%c0, %c0_1, %c0_2, %c0_3] : memref<16x1x8x8xf32, #tpu.memory_space<vmem>>, vector<16x1x8x8xf32>
    %4 = vector.shape_cast %3 : vector<16x1x8x8xf32> to vector<16x8x8xf32>
    %cst = arith.constant 0.000000e+00 : f32
    %5 = vector.broadcast %cst : f32 to vector<16x8x8xf32>
    %6 = arith.maximumf %4, %5 : vector<16x8x8xf32>
    %7 = vector.shape_cast %6 : vector<16x8x8xf32> to vector<128x8xf32>
    %c0_4 = arith.constant 0 : index
    %c0_5 = arith.constant 0 : index
    %c0_6 = arith.constant 0 : index
    %c0_7 = arith.constant 0 : index
    %8 = vector.load %arg2[%c0_4, %c0_5, %c0_6, %c0_7] : memref<16x1x8x8xf32, #tpu.memory_space<vmem>>, vector<16x1x8x8xf32>
    %9 = vector.shape_cast %8 : vector<16x1x8x8xf32> to vector<16x8x8xf32>
    %cst_8 = arith.constant 0.000000e+00 : f32
    %10 = vector.broadcast %cst_8 : f32 to vector<16x8x8xf32>
    %11 = arith.maximumf %9, %10 : vector<16x8x8xf32>
    %12 = vector.shape_cast %11 : vector<16x8x8xf32> to vector<128x8xf32>
    %c0_9 = arith.constant 0 : index
    %c0_10 = arith.constant 0 : index
    %13 = vector.load %arg3[%c0_9, %c0_10] : memref<8x2xf32, #tpu.memory_space<vmem>>, vector<8x2xf32>
    %cst_11 = arith.constant dense<0.000000e+00> : vector<128x2xf32>
    %14 = tpu.matmul %7, %13, %cst_11 {dimension_numbers = #tpu.dot_dimension_numbers<[1], [0], [0], [1], [0, 0, 1, 1], [], []>} : vector<128x8xf32>, vector<8x2xf32>, vector<128x2xf32> -> vector<128x2xf32>
    %c0_12 = arith.constant 0 : index
    %c0_13 = arith.constant 0 : index
    %15 = vector.load %arg4[%c0_12, %c0_13] : memref<8x2xf32, #tpu.memory_space<vmem>>, vector<8x2xf32>
    %cst_14 = arith.constant dense<0.000000e+00> : vector<128x2xf32>
    %16 = tpu.matmul %12, %15, %cst_14 {dimension_numbers = #tpu.dot_dimension_numbers<[1], [0], [0], [1], [0, 0, 1, 1], [], []>} : vector<128x8xf32>, vector<8x2xf32>, vector<128x2xf32> -> vector<128x2xf32>
    %c0_15 = arith.constant 0 : index
    %c0_16 = arith.constant 0 : index
    %c0_17 = arith.constant 0 : index
    %17 = vector.load %arg5[%c0_15, %c0_16, %c0_17] : memref<2x128x2xf32, #tpu.memory_space<vmem>>, vector<1x128x2xf32>
    %18 = vector.shape_cast %17 : vector<1x128x2xf32> to vector<128x2xf32>
    %19 = vector.shape_cast %14 : vector<128x2xf32> to vector<1x128x2xf32>
    tpu.vector_store %arg5[%c0_15, %c0_16, %c0_17], %19 {strides = array<i32>} : memref<2x128x2xf32, #tpu.memory_space<vmem>>, vector<1x128x2xf32>,
    %c1 = arith.constant 1 : index
    %c0_18 = arith.constant 0 : index
    %c0_19 = arith.constant 0 : index
    %20 = vector.load %arg5[%c1, %c0_18, %c0_19] : memref<2x128x2xf32, #tpu.memory_space<vmem>>, vector<1x128x2xf32>
    %21 = vector.shape_cast %20 : vector<1x128x2xf32> to vector<128x2xf32>
    %22 = vector.shape_cast %16 : vector<128x2xf32> to vector<1x128x2xf32>
    tpu.vector_store %arg5[%c1, %c0_18, %c0_19], %22 {strides = array<i32>} : memref<2x128x2xf32, #tpu.memory_space<vmem>>, vector<1x128x2xf32>,
    %c0_20 = arith.constant 0 : index
    %c0_21 = arith.constant 0 : index
    %23 = vector.load %arg6[%c0_20, %c0_21] : memref<2x2xf32, #tpu.memory_space<vmem>>, vector<2x2xf32>
    %cst_22 = arith.constant dense<0.000000e+00> : vector<2xf32>
    %24 = vector.multi_reduction <add>, %14, %cst_22 [0] : vector<128x2xf32> to vector<2xf32>
    %25 = vector.shape_cast %24 : vector<2xf32> to vector<1x2xf32>
    %cst_23 = arith.constant dense<0.000000e+00> : vector<2xf32>
    %26 = vector.multi_reduction <add>, %16, %cst_23 [0] : vector<128x2xf32> to vector<2xf32>
    %27 = vector.shape_cast %26 : vector<2xf32> to vector<1x2xf32>
    %28 = tpu.concatenate %25, %27 in 0 : vector<1x2xf32>, vector<1x2xf32> -> vector<2x2xf32>
    %29 = arith.addf %23, %28 : vector<2x2xf32>
    %c0_24 = arith.constant 0 : index
    %c0_25 = arith.constant 0 : index
    %30 = vector.load %arg6[%c0_24, %c0_25] : memref<2x2xf32, #tpu.memory_space<vmem>>, vector<2x2xf32>
    tpu.vector_store %arg6[%c0_24, %c0_25], %29 {strides = array<i32>} : memref<2x2xf32, #tpu.memory_space<vmem>>, vector<2x2xf32>,
    %c0_26 = arith.constant 0 : index
    %c0_27 = arith.constant 0 : index
    %31 = vector.load %arg7[%c0_26, %c0_27] : memref<2x2xf32, #tpu.memory_space<vmem>>, vector<2x2xf32>
    %32 = arith.mulf %14, %14 : vector<128x2xf32>
    %cst_28 = arith.constant dense<0.000000e+00> : vector<2xf32>
    %33 = vector.multi_reduction <add>, %32, %cst_28 [0] : vector<128x2xf32> to vector<2xf32>
    %34 = vector.shape_cast %33 : vector<2xf32> to vector<1x2xf32>
    %35 = arith.mulf %16, %16 : vector<128x2xf32>
    %cst_29 = arith.constant dense<0.000000e+00> : vector<2xf32>
    %36 = vector.multi_reduction <add>, %35, %cst_29 [0] : vector<128x2xf32> to vector<2xf32>
    %37 = vector.shape_cast %36 : vector<2xf32> to vector<1x2xf32>
    %38 = tpu.concatenate %34, %37 in 0 : vector<1x2xf32>, vector<1x2xf32> -> vector<2x2xf32>
    %39 = arith.addf %31, %38 : vector<2x2xf32>
    %c0_30 = arith.constant 0 : index
    %c0_31 = arith.constant 0 : index
    %40 = vector.load %arg7[%c0_30, %c0_31] : memref<2x2xf32, #tpu.memory_space<vmem>>, vector<2x2xf32>
    tpu.vector_store %arg7[%c0_30, %c0_31], %39 {strides = array<i32>} : memref<2x2xf32, #tpu.memory_space<vmem>>, vector<2x2xf32>,
    return
  }
  func.func @transform_0(%arg0: i32) -> (i32, i32, i32, i32) {
    %c0_i32 = arith.constant 0 : i32
    %c0_i32_0 = arith.constant 0 : i32
    %c0_i32_1 = arith.constant 0 : i32
    %c0_i32_2 = arith.constant 0 : i32
    return %arg0, %c0_i32, %c0_i32_0, %c0_i32_1 : i32, i32, i32, i32
  }
  func.func @transform_1(%arg0: i32) -> (i32, i32, i32, i32) {
    %c1_i32 = arith.constant 1 : i32
    %c0_i32 = arith.constant 0 : i32
    %c0_i32_0 = arith.constant 0 : i32
    %c0_i32_1 = arith.constant 0 : i32
    return %arg0, %c1_i32, %c0_i32, %c0_i32_0 : i32, i32, i32, i32
  }
  func.func @transform_2(%arg0: i32) -> (i32, i32) {
    %c0_i32 = arith.constant 0 : i32
    %c0_i32_0 = arith.constant 0 : i32
    %c0_i32_1 = arith.constant 0 : i32
    return %c0_i32, %c0_i32_0 : i32, i32
  }
  func.func @transform_3(%arg0: i32) -> (i32, i32) {
    %c0_i32 = arith.constant 0 : i32
    %c0_i32_0 = arith.constant 0 : i32
    %c0_i32_1 = arith.constant 0 : i32
    return %c0_i32, %c0_i32_0 : i32, i32
  }
  func.func @transform_4(%arg0: i32) -> (i32, i32, i32) {
    %c0_i32 = arith.constant 0 : i32
    %c0_i32_0 = arith.constant 0 : i32
    %c0_i32_1 = arith.constant 0 : i32
    return %c0_i32, %arg0, %c0_i32_0 : i32, i32, i32
  }
  func.func @transform_5(%arg0: i32) -> (i32, i32) {
    %c0_i32 = arith.constant 0 : i32
    %c0_i32_0 = arith.constant 0 : i32
    %c0_i32_1 = arith.constant 0 : i32
    return %c0_i32, %c0_i32_0 : i32, i32
  }
  func.func @transform_6(%arg0: i32) -> (i32, i32) {
    %c0_i32 = arith.constant 0 : i32
    %c0_i32_0 = arith.constant 0 : i32
    %c0_i32_1 = arith.constant 0 : i32
    return %c0_i32, %c0_i32_0 : i32, i32
  }
}

module attributes {stable_mosaic.version = 11 : i64} {
  func.func @_bn_apply_kernel(%arg0: i32, %arg1: memref<2x128x2xf32, #tpu.memory_space<vmem>>, %arg2: memref<2x1x2xf32, #tpu.memory_space<vmem>>, %arg3: memref<2x1x2xf32, #tpu.memory_space<vmem>>, %arg4: memref<2x128x2xf32, #tpu.memory_space<vmem>>) attributes {dimension_semantics = [#tpu.dimension_semantics<parallel>], iteration_bounds = array<i64: 1>, scalar_prefetch = 0 : i64, scratch_operands = 0 : i64, tpu.core_type = #tpu.core_type<tc>, window_params = [{transform_indices = @transform_0, window_bounds = array<i64: 2, 128, 2>}, {pipeline_mode = #tpu.pipeline_mode<synchronous>, transform_indices = @transform_1, window_bounds = array<i64: 2, 1, 2>}, {pipeline_mode = #tpu.pipeline_mode<synchronous>, transform_indices = @transform_2, window_bounds = array<i64: 2, 1, 2>}, {transform_indices = @transform_3, window_bounds = array<i64: 2, 128, 2>}]} {
    %c0 = arith.constant 0 : index
    %c0_0 = arith.constant 0 : index
    %c0_1 = arith.constant 0 : index
    %0 = vector.load %arg1[%c0, %c0_0, %c0_1] : memref<2x128x2xf32, #tpu.memory_space<vmem>>, vector<2x128x2xf32>
    %c0_2 = arith.constant 0 : index
    %c0_3 = arith.constant 0 : index
    %c0_4 = arith.constant 0 : index
    %1 = vector.load %arg2[%c0_2, %c0_3, %c0_4] : memref<2x1x2xf32, #tpu.memory_space<vmem>>, vector<2x1x2xf32>
    %2 = vector.broadcast %1 : vector<2x1x2xf32> to vector<2x128x2xf32>
    %3 = arith.mulf %0, %2 : vector<2x128x2xf32>
    %c0_5 = arith.constant 0 : index
    %c0_6 = arith.constant 0 : index
    %c0_7 = arith.constant 0 : index
    %4 = vector.load %arg3[%c0_5, %c0_6, %c0_7] : memref<2x1x2xf32, #tpu.memory_space<vmem>>, vector<2x1x2xf32>
    %5 = vector.broadcast %4 : vector<2x1x2xf32> to vector<2x128x2xf32>
    %6 = arith.addf %3, %5 : vector<2x128x2xf32>
    %c0_8 = arith.constant 0 : index
    %c0_9 = arith.constant 0 : index
    %c0_10 = arith.constant 0 : index
    %7 = vector.load %arg4[%c0_8, %c0_9, %c0_10] : memref<2x128x2xf32, #tpu.memory_space<vmem>>, vector<2x128x2xf32>
    tpu.vector_store %arg4[%c0_8, %c0_9, %c0_10], %6 {strides = array<i32>} : memref<2x128x2xf32, #tpu.memory_space<vmem>>, vector<2x128x2xf32>,
    return
  }
  func.func @transform_0(%arg0: i32) -> (i32, i32, i32) {
    %c0_i32 = arith.constant 0 : i32
    %c0_i32_0 = arith.constant 0 : i32
    %c0_i32_1 = arith.constant 0 : i32
    return %c0_i32, %arg0, %c0_i32_0 : i32, i32, i32
  }
  func.func @transform_1(%arg0: i32) -> (i32, i32, i32) {
    %c0_i32 = arith.constant 0 : i32
    %c0_i32_0 = arith.constant 0 : i32
    %c0_i32_1 = arith.constant 0 : i32
    %c0_i32_2 = arith.constant 0 : i32
    return %c0_i32, %c0_i32_0, %c0_i32_1 : i32, i32, i32
  }
  func.func @transform_2(%arg0: i32) -> (i32, i32, i32) {
    %c0_i32 = arith.constant 0 : i32
    %c0_i32_0 = arith.constant 0 : i32
    %c0_i32_1 = arith.constant 0 : i32
    %c0_i32_2 = arith.constant 0 : i32
    return %c0_i32, %c0_i32_0, %c0_i32_1 : i32, i32, i32
  }
  func.func @transform_3(%arg0: i32) -> (i32, i32, i32) {
    %c0_i32 = arith.constant 0 : i32
    %c0_i32_0 = arith.constant 0 : i32
    %c0_i32_1 = arith.constant 0 : i32
    return %c0_i32, %arg0, %c0_i32_0 : i32, i32, i32
  }
}

</mosaic_0001>

<llo_original>
// kernel: factorized_reduce.3
$region0: #{factorized_reduce.3}
  #allocation0 [shape = 'u32[]', space=smem, size = 0x4, offset = 0x4, fixed_abs, tag = 'smem constant byte address 0x4 - core index']
  #allocation1 [shape = 'u32[144,128]{1,0:T(1,128)}', space=vmem, size = 0x12000, scoped, tag = 'internal scratch']
  %s0 = inlined_call_operand.vmem [shape: f32[2,128,2], index: 0, kind: input, shape index: {}, may-alias: {0,3}]
  %s1 = inlined_call_operand.vmem [shape: f32[2,1,2], index: 1, kind: input, shape index: {}]
  %s2 = inlined_call_operand.vmem [shape: f32[2,1,2], index: 2, kind: input, shape index: {}]
  %s3 = inlined_call_operand.vmem [shape: f32[2,128,2], index: 3, kind: output, shape index: {}, may-alias: {0,3}]
  %s4 = sld [smem:[#allocation0]]
  $region22: #{factorized_reduce.3} parent=0
    _
  %s6 = ssub.s32 1, %s4
  %s7 = scalar_select 0, %s6, %s4
  // Predicated region
  $region2: #{factorized_reduce.3} parent=0 // pred_check
    _
  $region3: #{factorized_reduce.3} parent=0 // pred_check_branch
    %9 = sbr.rel (0) target = $region5
  $region4: #{factorized_reduce.3} parent=0 // pred_region
    _
  $region5: #{factorized_reduce.3} parent=0 // pred_fallthru
    _
  // Predicated region
  $region6: #{factorized_reduce.3} parent=0 // pred_check
    _
  $region7: #{factorized_reduce.3} parent=0 // pred_check_branch
    %11 = sbr.rel (0) target = $region9
  $region8: #{factorized_reduce.3} parent=0 // pred_region
    _
  $region9: #{factorized_reduce.3} parent=0 // pred_fallthru
    _
  // Predicated region
  $region10: #{factorized_reduce.3} parent=0 // pred_check
    _
  $region11: #{factorized_reduce.3} parent=0 // pred_check_branch
    %13 = sbr.rel (0) target = $region13
  $region12: #{factorized_reduce.3} parent=0 // pred_region
    _
  $region13: #{factorized_reduce.3} parent=0 // pred_fallthru
    _
  %v14 = vld [vmem:[%s0] sm:$0xff]
  %v15 = vld [vmem:[%s0 + $0x8] sm:$0xff]
  %v16 = vld [vmem:[%s0 + $0x10] sm:$0xff]
  %v17 = vld [vmem:[%s0 + $0x18] sm:$0xff]
  %v18 = vld [vmem:[%s0 + $0x20] sm:$0xff]
  %v19 = vld [vmem:[%s0 + $0x28] sm:$0xff]
  %v20 = vld [vmem:[%s0 + $0x30] sm:$0xff]
  %v21 = vld [vmem:[%s0 + $0x38] sm:$0xff]
  %v22 = vld [vmem:[%s0 + $0x40] sm:$0xff]
  %v23 = vld [vmem:[%s0 + $0x48] sm:$0xff]
  %v24 = vld [vmem:[%s0 + $0x50] sm:$0xff]
  %v25 = vld [vmem:[%s0 + $0x58] sm:$0xff]
  %v26 = vld [vmem:[%s0 + $0x60] sm:$0xff]
  %v27 = vld [vmem:[%s0 + $0x68] sm:$0xff]
  %v28 = vld [vmem:[%s0 + $0x70] sm:$0xff]
  %v29 = vld [vmem:[%s0 + $0x78] sm:$0xff]
  %v30 = vld [vmem:[%s0 + $0x80] sm:$0xff]
  %v31 = vld [vmem:[%s0 + $0x88] sm:$0xff]
  %v32 = vld [vmem:[%s0 + $0x90] sm:$0xff]
  %v33 = vld [vmem:[%s0 + $0x98] sm:$0xff]
  %v34 = vld [vmem:[%s0 + $0xa0] sm:$0xff]
  %v35 = vld [vmem:[%s0 + $0xa8] sm:$0xff]
  %v36 = vld [vmem:[%s0 + $0xb0] sm:$0xff]
  %v37 = vld [vmem:[%s0 + $0xb8] sm:$0xff]
  %v38 = vld [vmem:[%s0 + $0xc0] sm:$0xff]
  %v39 = vld [vmem:[%s0 + $0xc8] sm:$0xff]
  %v40 = vld [vmem:[%s0 + $0xd0] sm:$0xff]
  %v41 = vld [vmem:[%s0 + $0xd8] sm:$0xff]
  %v42 = vld [vmem:[%s0 + $0xe0] sm:$0xff]
  %v43 = vld [vmem:[%s0 + $0xe8] sm:$0xff]
  %v44 = vld [vmem:[%s0 + $0xf0] sm:$0xff]
  %v45 = vld [vmem:[%s0 + $0xf8] sm:$0xff]
  %v46 = vld [vmem:[%s1] sm:$0x1]
  %v47 = vld [vmem:[%s1 + $0x1] sm:$0x1]
  %v50 = vlaneseq
  %v51 = vshrl.u32 %v50, 7
  %v52 = vsub.s32 0, %v51
  %v53 = vrot.slane %v46, %v52
  %v54 = vlaneseq
  %v55 = vshrl.u32 %v54, 7
  %v56 = vsub.s32 0, %v55
  %v57 = vrot.slane %v47, %v56
  %v60 = vmul.f32 %v14, %v53
  %v61 = vmul.f32 %v15, %v53
  %v62 = vmul.f32 %v16, %v53
  %v63 = vmul.f32 %v17, %v53
  %v64 = vmul.f32 %v18, %v53
  %v65 = vmul.f32 %v19, %v53
  %v66 = vmul.f32 %v20, %v53
  %v67 = vmul.f32 %v21, %v53
  %v68 = vmul.f32 %v22, %v53
  %v69 = vmul.f32 %v23, %v53
  %v70 = vmul.f32 %v24, %v53
  %v71 = vmul.f32 %v25, %v53
  %v72 = vmul.f32 %v26, %v53
  %v73 = vmul.f32 %v27, %v53
  %v74 = vmul.f32 %v28, %v53
  %v75 = vmul.f32 %v29, %v53
  %v76 = vmul.f32 %v30, %v57
  %v77 = vmul.f32 %v31, %v57
  %v78 = vmul.f32 %v32, %v57
  %v79 = vmul.f32 %v33, %v57
  %v80 = vmul.f32 %v34, %v57
  %v81 = vmul.f32 %v35, %v57
  %v82 = vmul.f32 %v36, %v57
  %v83 = vmul.f32 %v37, %v57
  %v84 = vmul.f32 %v38, %v57
  %v85 = vmul.f32 %v39, %v57
  %v86 = vmul.f32 %v40, %v57
  %v87 = vmul.f32 %v41, %v57
  %v88 = vmul.f32 %v42, %v57
  %v89 = vmul.f32 %v43, %v57
  %v90 = vmul.f32 %v44, %v57
  %v91 = vmul.f32 %v45, %v57
  %v92 = vld [vmem:[%s2] sm:$0x1]
  %v93 = vld [vmem:[%s2 + $0x1] sm:$0x1]
  %v96 = vlaneseq
  %v97 = vshrl.u32 %v96, 7
  %v98 = vsub.s32 0, %v97
  %v99 = vrot.slane %v92, %v98
  %v100 = vlaneseq
  %v101 = vshrl.u32 %v100, 7
  %v102 = vsub.s32 0, %v101
  %v103 = vrot.slane %v93, %v102
  %v106 = vadd.f32 %v60, %v99
  %v107 = vadd.f32 %v61, %v99
  %v108 = vadd.f32 %v62, %v99
  %v109 = vadd.f32 %v63, %v99
  %v110 = vadd.f32 %v64, %v99
  %v111 = vadd.f32 %v65, %v99
  %v112 = vadd.f32 %v66, %v99
  %v113 = vadd.f32 %v67, %v99
  %v114 = vadd.f32 %v68, %v99
  %v115 = vadd.f32 %v69, %v99
  %v116 = vadd.f32 %v70, %v99
  %v117 = vadd.f32 %v71, %v99
  %v118 = vadd.f32 %v72, %v99
  %v119 = vadd.f32 %v73, %v99
  %v120 = vadd.f32 %v74, %v99
  %v121 = vadd.f32 %v75, %v99
  %v122 = vadd.f32 %v76, %v103
  %v123 = vadd.f32 %v77, %v103
  %v124 = vadd.f32 %v78, %v103
  %v125 = vadd.f32 %v79, %v103
  %v126 = vadd.f32 %v80, %v103
  %v127 = vadd.f32 %v81, %v103
  %v128 = vadd.f32 %v82, %v103
  %v129 = vadd.f32 %v83, %v103
  %v130 = vadd.f32 %v84, %v103
  %v131 = vadd.f32 %v85, %v103
  %v132 = vadd.f32 %v86, %v103
  %v133 = vadd.f32 %v87, %v103
  %v134 = vadd.f32 %v88, %v103
  %v135 = vadd.f32 %v89, %v103
  %v136 = vadd.f32 %v90, %v103
  %v137 = vadd.f32 %v91, %v103
  %vm138 = vcmask 15360
  %139 = vst.msk [vmem:[%s3] sm:$0xff] %vm138, %v106
  %140 = vst.msk [vmem:[%s3 + $0x8] sm:$0xff] %vm138, %v107
  %141 = vst.msk [vmem:[%s3 + $0x10] sm:$0xff] %vm138, %v108
  %142 = vst.msk [vmem:[%s3 + $0x18] sm:$0xff] %vm138, %v109
  %143 = vst.msk [vmem:[%s3 + $0x20] sm:$0xff] %vm138, %v110
  %144 = vst.msk [vmem:[%s3 + $0x28] sm:$0xff] %vm138, %v111
  %145 = vst.msk [vmem:[%s3 + $0x30] sm:$0xff] %vm138, %v112
  %146 = vst.msk [vmem:[%s3 + $0x38] sm:$0xff] %vm138, %v113
  %147 = vst.msk [vmem:[%s3 + $0x40] sm:$0xff] %vm138, %v114
  %148 = vst.msk [vmem:[%s3 + $0x48] sm:$0xff] %vm138, %v115
  %149 = vst.msk [vmem:[%s3 + $0x50] sm:$0xff] %vm138, %v116
  %150 = vst.msk [vmem:[%s3 + $0x58] sm:$0xff] %vm138, %v117
  %151 = vst.msk [vmem:[%s3 + $0x60] sm:$0xff] %vm138, %v118
  %152 = vst.msk [vmem:[%s3 + $0x68] sm:$0xff] %vm138, %v119
  %153 = vst.msk [vmem:[%s3 + $0x70] sm:$0xff] %vm138, %v120
  %154 = vst.msk [vmem:[%s3 + $0x78] sm:$0xff] %vm138, %v121
  %155 = vst.msk [vmem:[%s3 + $0x80] sm:$0xff] %vm138, %v122
  %156 = vst.msk [vmem:[%s3 + $0x88] sm:$0xff] %vm138, %v123
  %157 = vst.msk [vmem:[%s3 + $0x90] sm:$0xff] %vm138, %v124
  %158 = vst.msk [vmem:[%s3 + $0x98] sm:$0xff] %vm138, %v125
  %159 = vst.msk [vmem:[%s3 + $0xa0] sm:$0xff] %vm138, %v126
  %160 = vst.msk [vmem:[%s3 + $0xa8] sm:$0xff] %vm138, %v127
  %161 = vst.msk [vmem:[%s3 + $0xb0] sm:$0xff] %vm138, %v128
  %162 = vst.msk [vmem:[%s3 + $0xb8] sm:$0xff] %vm138, %v129
  %163 = vst.msk [vmem:[%s3 + $0xc0] sm:$0xff] %vm138, %v130
  %164 = vst.msk [vmem:[%s3 + $0xc8] sm:$0xff] %vm138, %v131
  %165 = vst.msk [vmem:[%s3 + $0xd0] sm:$0xff] %vm138, %v132
  %166 = vst.msk [vmem:[%s3 + $0xd8] sm:$0xff] %vm138, %v133
  %167 = vst.msk [vmem:[%s3 + $0xe0] sm:$0xff] %vm138, %v134
  %168 = vst.msk [vmem:[%s3 + $0xe8] sm:$0xff] %vm138, %v135
  %169 = vst.msk [vmem:[%s3 + $0xf0] sm:$0xff] %vm138, %v136
  %170 = vst.msk [vmem:[%s3 + $0xf8] sm:$0xff] %vm138, %v137
  // Predicated region
  $region14: #{factorized_reduce.3} parent=0 // pred_check
    _
  $region15: #{factorized_reduce.3} parent=0 // pred_check_branch
    %172 = sbr.rel (0) target = $region17
  $region16: #{factorized_reduce.3} parent=0 // pred_region
    _
  $region17: #{factorized_reduce.3} parent=0 // pred_fallthru
    _
  // Predicated region
  $region18: #{factorized_reduce.3} parent=0 // pred_check
    _
  $region19: #{factorized_reduce.3} parent=0 // pred_check_branch
    %174 = sbr.rel (0) target = $region21
  $region20: #{factorized_reduce.3} parent=0 // pred_region
    _
  $region21: #{factorized_reduce.3} parent=0 // pred_fallthru
    _

// kernel: factorized_reduce.2
$region0: #{factorized_reduce.2}
  #allocation0 [shape = 'u32[]', space=smem, size = 0x4, offset = 0x4, fixed_abs, tag = 'smem constant byte address 0x4 - core index']
  #allocation1 [shape = 'u32[144,128]{1,0:T(1,128)}', space=vmem, size = 0x12000, scoped, tag = 'internal scratch']
  %s0 = inlined_call_operand.vmem [shape: f32[16,2,8,8], index: 0, kind: input, shape index: {}, may-alias: {0,1}]
  %s1 = inlined_call_operand.vmem [shape: f32[16,2,8,8], index: 1, kind: input, shape index: {}, may-alias: {0,1}]
  %s2 = inlined_call_operand.vmem [shape: f32[8,2], index: 2, kind: input, shape index: {}]
  %s3 = inlined_call_operand.vmem [shape: f32[8,2], index: 3, kind: input, shape index: {}]
  %s4 = inlined_call_operand.vmem [shape: f32[2,128,2], index: 4, kind: output, shape index: {0}]
  %s5 = inlined_call_operand.vmem [shape: f32[2,2], index: 5, kind: output, shape index: {1}]
  %s6 = inlined_call_operand.vmem [shape: f32[2,2], index: 6, kind: output, shape index: {2}]
  %7 = xla_tuple %s4, %s5, %s6
  %s8 = sld [smem:[#allocation0]]
  $region122: #{factorized_reduce.2} parent=0
    _
  %s10 = ssub.s32 1, %s8
  %s11 = scalar_select 0, %s10, %s8
  $region1: #{factorized_reduce.2} parent=0
    #allocation2 [shape = 'u8[65536]{0}', space=vmem, size = 0x10000, scoped, tag = 'input window, operand 0, single buffered']
    #allocation3 [shape = 'u8[65536]{0}', space=vmem, size = 0x10000, scoped, tag = 'input window, operand 1, single buffered']
    // Predicated region
    $region2: #{factorized_reduce.2} parent=1 // pred_check
      _
    $region3: #{factorized_reduce.2} parent=1 // pred_check_branch
      %13 = sbr.rel (0) target = $region5
    $region4: #{factorized_reduce.2} parent=1 // pred_region
      // Predicated region
      $region6: #{factorized_reduce.2} parent=4 // pred_check
        _
      $region7: #{factorized_reduce.2} parent=4 // pred_check_branch
        %15 = sbr.rel (0) target = $region9
      $region8: #{factorized_reduce.2} parent=4 // pred_region
        // Predicated region
        $region10: #{factorized_reduce.2} parent=8 // pred_check
          _
        $region11: #{factorized_reduce.2} parent=8 // pred_check_branch
          %17 = sbr.rel (0) target = $region13
        $region12: #{factorized_reduce.2} parent=8 // pred_region
          // Predicated region
          $region25: #{factorized_reduce.2} parent=12 // pred_check
            _
          $region26: #{factorized_reduce.2} parent=12 // pred_check_branch
            %62 = sbr.rel (0) target = $region28
          $region27: #{factorized_reduce.2} parent=12 // pred_region
            loop: start=0, step=1, limit=1
            $region29: #{factorized_reduce.2} parent=27 // loop_pre_header
              _
            $region30: #{factorized_reduce.2} parent=27 // loop_header
              %s64 = sphi 0, %s68
              %p65 = scmp.ge.s32.totalorder %s64, 1
              %s69 = sphi %s0, %s0
              %s70 = sphi [#allocation2], [#allocation2]
            $region31: #{factorized_reduce.2} parent=27 // loop_header_branch
              %67 = sbr.rel (%p65) target = $region35
            $region32: #{factorized_reduce.2} parent=27 // loop_body
              %v71 = vld [vmem:[%s69] sm:$0xff]
              %72 = vst [vmem:[%s70] sm:$0xff] %v71
              %v73 = vld [vmem:[%s69 + $0x10] sm:$0xff]
              %74 = vst [vmem:[%s70 + $0x8] sm:$0xff] %v73
              %v75 = vld [vmem:[%s69 + $0x20] sm:$0xff]
              %76 = vst [vmem:[%s70 + $0x10] sm:$0xff] %v75
              %v77 = vld [vmem:[%s69 + $0x30] sm:$0xff]
              %78 = vst [vmem:[%s70 + $0x18] sm:$0xff] %v77
              %v79 = vld [vmem:[%s69 + $0x40] sm:$0xff]
              %80 = vst [vmem:[%s70 + $0x20] sm:$0xff] %v79
              %v81 = vld [vmem:[%s69 + $0x50] sm:$0xff]
              %82 = vst [vmem:[%s70 + $0x28] sm:$0xff] %v81
              %v83 = vld [vmem:[%s69 + $0x60] sm:$0xff]
              %84 = vst [vmem:[%s70 + $0x30] sm:$0xff] %v83
              %v85 = vld [vmem:[%s69 + $0x70] sm:$0xff]
              %86 = vst [vmem:[%s70 + $0x38] sm:$0xff] %v85
              %v87 = vld [vmem:[%s69 + $0x80] sm:$0xff]
              %88 = vst [vmem:[%s70 + $0x40] sm:$0xff] %v87
              %v89 = vld [vmem:[%s69 + $0x90] sm:$0xff]
              %90 = vst [vmem:[%s70 + $0x48] sm:$0xff] %v89
              %v91 = vld [vmem:[%s69 + $0xa0] sm:$0xff]
              %92 = vst [vmem:[%s70 + $0x50] sm:$0xff] %v91
              %v93 = vld [vmem:[%s69 + $0xb0] sm:$0xff]
              %94 = vst [vmem:[%s70 + $0x58] sm:$0xff] %v93
              %v95 = vld [vmem:[%s69 + $0xc0] sm:$0xff]
              %96 = vst [vmem:[%s70 + $0x60] sm:$0xff] %v95
              %v97 = vld [vmem:[%s69 + $0xd0] sm:$0xff]
              %98 = vst [vmem:[%s70 + $0x68] sm:$0xff] %v97
              %v99 = vld [vmem:[%s69 + $0xe0] sm:$0xff]
              %100 = vst [vmem:[%s70 + $0x70] sm:$0xff] %v99
              %v101 = vld [vmem:[%s69 + $0xf0] sm:$0xff]
              %102 = vst [vmem:[%s70 + $0x78] sm:$0xff] %v101
            $region33: #{factorized_reduce.2} parent=27 // loop_footer
              %s68 = sadd.s32 1, %s64
            $region34: #{factorized_reduce.2} parent=27 // loop_footer_branch
              %63 = sbr.rel target = $region30
            $region35: #{factorized_reduce.2} parent=27 // loop_exit
              _
          $region28: #{factorized_reduce.2} parent=12 // pred_fallthru
            _
          // Predicated region
          $region36: #{factorized_reduce.2} parent=12 // pred_check
            _
          $region37: #{factorized_reduce.2} parent=12 // pred_check_branch
            %104 = sbr.rel target = $region39
          $region38: #{factorized_reduce.2} parent=12 // pred_region
            _
          $region39: #{factorized_reduce.2} parent=12 // pred_fallthru
            _
        $region13: #{factorized_reduce.2} parent=8 // pred_fallthru
          _
        // Predicated region
        $region14: #{factorized_reduce.2} parent=8 // pred_check
          _
        $region15: #{factorized_reduce.2} parent=8 // pred_check_branch
          %19 = sbr.rel target = $region17
        $region16: #{factorized_reduce.2} parent=8 // pred_region
          loop: start=0, step=1, limit=1
          $region18: #{factorized_reduce.2} parent=16 // loop_pre_header
            _
          $region19: #{factorized_reduce.2} parent=16 // loop_header
            %s22 = sphi 0, %s26
            %p23 = scmp.ge.s32.totalorder %s22, 1
            %s27 = sphi %s0, %s0
            %s28 = sphi [#allocation2], [#allocation2]
          $region20: #{factorized_reduce.2} parent=16 // loop_header_branch
            %25 = sbr.rel (%p23) target = $region24
          $region21: #{factorized_reduce.2} parent=16 // loop_body
            %v29 = vld [vmem:[%s27] sm:$0xff]
            %30 = vst [vmem:[%s28] sm:$0xff] %v29
            %v31 = vld [vmem:[%s27 + $0x10] sm:$0xff]
            %32 = vst [vmem:[%s28 + $0x8] sm:$0xff] %v31
            %v33 = vld [vmem:[%s27 + $0x20] sm:$0xff]
            %34 = vst [vmem:[%s28 + $0x10] sm:$0xff] %v33
            %v35 = vld [vmem:[%s27 + $0x30] sm:$0xff]
            %36 = vst [vmem:[%s28 + $0x18] sm:$0xff] %v35
            %v37 = vld [vmem:[%s27 + $0x40] sm:$0xff]
            %38 = vst [vmem:[%s28 + $0x20] sm:$0xff] %v37
            %v39 = vld [vmem:[%s27 + $0x50] sm:$0xff]
            %40 = vst [vmem:[%s28 + $0x28] sm:$0xff] %v39
            %v41 = vld [vmem:[%s27 + $0x60] sm:$0xff]
            %42 = vst [vmem:[%s28 + $0x30] sm:$0xff] %v41
            %v43 = vld [vmem:[%s27 + $0x70] sm:$0xff]
            %44 = vst [vmem:[%s28 + $0x38] sm:$0xff] %v43
            %v45 = vld [vmem:[%s27 + $0x80] sm:$0xff]
            %46 = vst [vmem:[%s28 + $0x40] sm:$0xff] %v45
            %v47 = vld [vmem:[%s27 + $0x90] sm:$0xff]
            %48 = vst [vmem:[%s28 + $0x48] sm:$0xff] %v47
            %v49 = vld [vmem:[%s27 + $0xa0] sm:$0xff]
            %50 = vst [vmem:[%s28 + $0x50] sm:$0xff] %v49
            %v51 = vld [vmem:[%s27 + $0xb0] sm:$0xff]
            %52 = vst [vmem:[%s28 + $0x58] sm:$0xff] %v51
            %v53 = vld [vmem:[%s27 + $0xc0] sm:$0xff]
            %54 = vst [vmem:[%s28 + $0x60] sm:$0xff] %v53
            %v55 = vld [vmem:[%s27 + $0xd0] sm:$0xff]
            %56 = vst [vmem:[%s28 + $0x68] sm:$0xff] %v55
            %v57 = vld [vmem:[%s27 + $0xe0] sm:$0xff]
            %58 = vst [vmem:[%s28 + $0x70] sm:$0xff] %v57
            %v59 = vld [vmem:[%s27 + $0xf0] sm:$0xff]
            %60 = vst [vmem:[%s28 + $0x78] sm:$0xff] %v59
          $region22: #{factorized_reduce.2} parent=16 // loop_footer
            %s26 = sadd.s32 1, %s22
          $region23: #{factorized_reduce.2} parent=16 // loop_footer_branch
            %21 = sbr.rel target = $region19
          $region24: #{factorized_reduce.2} parent=16 // loop_exit
            _
        $region17: #{factorized_reduce.2} parent=8 // pred_fallthru
          _
      $region9: #{factorized_reduce.2} parent=4 // pred_fallthru
        _
      %105 = vnop
    $region5: #{factorized_reduce.2} parent=1 // pred_fallthru
      _
    // Predicated region
    $region40: #{factorized_reduce.2} parent=1 // pred_check
      _
    $region41: #{factorized_reduce.2} parent=1 // pred_check_branch
      %107 = sbr.rel (0) target = $region43
    $region42: #{factorized_reduce.2} parent=1 // pred_region
      %s108 = scalar_lea.vmem %s1, 8
      // Predicated region
      $region44: #{factorized_reduce.2} parent=42 // pred_check
        _
      $region45: #{factorized_reduce.2} parent=42 // pred_check_branch
        %110 = sbr.rel (0) target = $region47
      $region46: #{factorized_reduce.2} parent=42 // pred_region
        // Predicated region
        $region48: #{factorized_reduce.2} parent=46 // pred_check
          _
        $region49: #{factorized_reduce.2} parent=46 // pred_check_branch
          %112 = sbr.rel (0) target = $region51
        $region50: #{factorized_reduce.2} parent=46 // pred_region
          // Predicated region
          $region63: #{factorized_reduce.2} parent=50 // pred_check
            _
          $region64: #{factorized_reduce.2} parent=50 // pred_check_branch
            %157 = sbr.rel (0) target = $region66
          $region65: #{factorized_reduce.2} parent=50 // pred_region
            loop: start=0, step=1, limit=1
            $region67: #{factorized_reduce.2} parent=65 // loop_pre_header
              _
            $region68: #{factorized_reduce.2} parent=65 // loop_header
              %s159 = sphi 0, %s163
              %p160 = scmp.ge.s32.totalorder %s159, 1
              %s164 = sphi %s108, %s108
              %s165 = sphi [#allocation3], [#allocation3]
            $region69: #{factorized_reduce.2} parent=65 // loop_header_branch
              %162 = sbr.rel (%p160) target = $region73
            $region70: #{factorized_reduce.2} parent=65 // loop_body
              %v166 = vld [vmem:[%s164] sm:$0xff]
              %167 = vst [vmem:[%s165] sm:$0xff] %v166
              %v168 = vld [vmem:[%s164 + $0x10] sm:$0xff]
              %169 = vst [vmem:[%s165 + $0x8] sm:$0xff] %v168
              %v170 = vld [vmem:[%s164 + $0x20] sm:$0xff]
              %171 = vst [vmem:[%s165 + $0x10] sm:$0xff] %v170
              %v172 = vld [vmem:[%s164 + $0x30] sm:$0xff]
              %173 = vst [vmem:[%s165 + $0x18] sm:$0xff] %v172
              %v174 = vld [vmem:[%s164 + $0x40] sm:$0xff]
              %175 = vst [vmem:[%s165 + $0x20] sm:$0xff] %v174
              %v176 = vld [vmem:[%s164 + $0x50] sm:$0xff]
              %177 = vst [vmem:[%s165 + $0x28] sm:$0xff] %v176
              %v178 = vld [vmem:[%s164 + $0x60] sm:$0xff]
              %179 = vst [vmem:[%s165 + $0x30] sm:$0xff] %v178
              %v180 = vld [vmem:[%s164 + $0x70] sm:$0xff]
              %181 = vst [vmem:[%s165 + $0x38] sm:$0xff] %v180
              %v182 = vld [vmem:[%s164 + $0x80] sm:$0xff]
              %183 = vst [vmem:[%s165 + $0x40] sm:$0xff] %v182
              %v184 = vld [vmem:[%s164 + $0x90] sm:$0xff]
              %185 = vst [vmem:[%s165 + $0x48] sm:$0xff] %v184
              %v186 = vld [vmem:[%s164 + $0xa0] sm:$0xff]
              %187 = vst [vmem:[%s165 + $0x50] sm:$0xff] %v186
              %v188 = vld [vmem:[%s164 + $0xb0] sm:$0xff]
              %189 = vst [vmem:[%s165 + $0x58] sm:$0xff] %v188
              %v190 = vld [vmem:[%s164 + $0xc0] sm:$0xff]
              %191 = vst [vmem:[%s165 + $0x60] sm:$0xff] %v190
              %v192 = vld [vmem:[%s164 + $0xd0] sm:$0xff]
              %193 = vst [vmem:[%s165 + $0x68] sm:$0xff] %v192
              %v194 = vld [vmem:[%s164 + $0xe0] sm:$0xff]
              %195 = vst [vmem:[%s165 + $0x70] sm:$0xff] %v194
              %v196 = vld [vmem:[%s164 + $0xf0] sm:$0xff]
              %197 = vst [vmem:[%s165 + $0x78] sm:$0xff] %v196
            $region71: #{factorized_reduce.2} parent=65 // loop_footer
              %s163 = sadd.s32 1, %s159
            $region72: #{factorized_reduce.2} parent=65 // loop_footer_branch
              %158 = sbr.rel target = $region68
            $region73: #{factorized_reduce.2} parent=65 // loop_exit
              _
          $region66: #{factorized_reduce.2} parent=50 // pred_fallthru
            _
          // Predicated region
          $region74: #{factorized_reduce.2} parent=50 // pred_check
            _
          $region75: #{factorized_reduce.2} parent=50 // pred_check_branch
            %199 = sbr.rel target = $region77
          $region76: #{factorized_reduce.2} parent=50 // pred_region
            _
          $region77: #{factorized_reduce.2} parent=50 // pred_fallthru
            _
        $region51: #{factorized_reduce.2} parent=46 // pred_fallthru
          _
        // Predicated region
        $region52: #{factorized_reduce.2} parent=46 // pred_check
          _
        $region53: #{factorized_reduce.2} parent=46 // pred_check_branch
          %114 = sbr.rel target = $region55
        $region54: #{factorized_reduce.2} parent=46 // pred_region
          loop: start=0, step=1, limit=1
          $region56: #{factorized_reduce.2} parent=54 // loop_pre_header
            _
          $region57: #{factorized_reduce.2} parent=54 // loop_header
            %s117 = sphi 0, %s121
            %p118 = scmp.ge.s32.totalorder %s117, 1
            %s122 = sphi %s108, %s108
            %s123 = sphi [#allocation3], [#allocation3]
          $region58: #{factorized_reduce.2} parent=54 // loop_header_branch
            %120 = sbr.rel (%p118) target = $region62
          $region59: #{factorized_reduce.2} parent=54 // loop_body
            %v124 = vld [vmem:[%s122] sm:$0xff]
            %125 = vst [vmem:[%s123] sm:$0xff] %v124
            %v126 = vld [vmem:[%s122 + $0x10] sm:$0xff]
            %127 = vst [vmem:[%s123 + $0x8] sm:$0xff] %v126
            %v128 = vld [vmem:[%s122 + $0x20] sm:$0xff]
            %129 = vst [vmem:[%s123 + $0x10] sm:$0xff] %v128
            %v130 = vld [vmem:[%s122 + $0x30] sm:$0xff]
            %131 = vst [vmem:[%s123 + $0x18] sm:$0xff] %v130
            %v132 = vld [vmem:[%s122 + $0x40] sm:$0xff]
            %133 = vst [vmem:[%s123 + $0x20] sm:$0xff] %v132
            %v134 = vld [vmem:[%s122 + $0x50] sm:$0xff]
            %135 = vst [vmem:[%s123 + $0x28] sm:$0xff] %v134
            %v136 = vld [vmem:[%s122 + $0x60] sm:$0xff]
            %137 = vst [vmem:[%s123 + $0x30] sm:$0xff] %v136
            %v138 = vld [vmem:[%s122 + $0x70] sm:$0xff]
            %139 = vst [vmem:[%s123 + $0x38] sm:$0xff] %v138
            %v140 = vld [vmem:[%s122 + $0x80] sm:$0xff]
            %141 = vst [vmem:[%s123 + $0x40] sm:$0xff] %v140
            %v142 = vld [vmem:[%s122 + $0x90] sm:$0xff]
            %143 = vst [vmem:[%s123 + $0x48] sm:$0xff] %v142
            %v144 = vld [vmem:[%s122 + $0xa0] sm:$0xff]
            %145 = vst [vmem:[%s123 + $0x50] sm:$0xff] %v144
            %v146 = vld [vmem:[%s122 + $0xb0] sm:$0xff]
            %147 = vst [vmem:[%s123 + $0x58] sm:$0xff] %v146
            %v148 = vld [vmem:[%s122 + $0xc0] sm:$0xff]
            %149 = vst [vmem:[%s123 + $0x60] sm:$0xff] %v148
            %v150 = vld [vmem:[%s122 + $0xd0] sm:$0xff]
            %151 = vst [vmem:[%s123 + $0x68] sm:$0xff] %v150
            %v152 = vld [vmem:[%s122 + $0xe0] sm:$0xff]
            %153 = vst [vmem:[%s123 + $0x70] sm:$0xff] %v152
            %v154 = vld [vmem:[%s122 + $0xf0] sm:$0xff]
            %155 = vst [vmem:[%s123 + $0x78] sm:$0xff] %v154
          $region60: #{factorized_reduce.2} parent=54 // loop_footer
            %s121 = sadd.s32 1, %s117
          $region61: #{factorized_reduce.2} parent=54 // loop_footer_branch
            %116 = sbr.rel target = $region57
          $region62: #{factorized_reduce.2} parent=54 // loop_exit
            _
        $region55: #{factorized_reduce.2} parent=46 // pred_fallthru
          _
      $region47: #{factorized_reduce.2} parent=42 // pred_fallthru
        _
      %200 = vnop
    $region43: #{factorized_reduce.2} parent=1 // pred_fallthru
      _
    // Predicated region
    $region78: #{factorized_reduce.2} parent=1 // pred_check
      _
    $region79: #{factorized_reduce.2} parent=1 // pred_check_branch
      %202 = sbr.rel (0) target = $region81
    $region80: #{factorized_reduce.2} parent=1 // pred_region
      _
    $region81: #{factorized_reduce.2} parent=1 // pred_fallthru
      _
    // Predicated region
    $region82: #{factorized_reduce.2} parent=1 // pred_check
      _
    $region83: #{factorized_reduce.2} parent=1 // pred_check_branch
      %204 = sbr.rel (0) target = $region85
    $region84: #{factorized_reduce.2} parent=1 // pred_region
      _
    $region85: #{factorized_reduce.2} parent=1 // pred_fallthru
      _
    // Predicated region
    $region86: #{factorized_reduce.2} parent=1 // pred_check
      _
    $region87: #{factorized_reduce.2} parent=1 // pred_check_branch
      %206 = sbr.rel (0) target = $region89
    $region88: #{factorized_reduce.2} parent=1 // pred_region
      _
    $region89: #{factorized_reduce.2} parent=1 // pred_fallthru
      _
    // Predicated region
    $region90: #{factorized_reduce.2} parent=1 // pred_check
      _
    $region91: #{factorized_reduce.2} parent=1 // pred_check_branch
      %208 = sbr.rel (0) target = $region93
    $region92: #{factorized_reduce.2} parent=1 // pred_region
      _
    $region93: #{factorized_reduce.2} parent=1 // pred_fallthru
      _
    %p209 = scmp.eq.s32.totalorder 0, 0
    // Predicated region
    $region94: #{factorized_reduce.2} parent=1 // pred_check
      %p210 = pneg %p209
    $region95: #{factorized_reduce.2} parent=1 // pred_check_branch
      %212 = sbr.rel (%p210) target = $region97
    $region96: #{factorized_reduce.2} parent=1 // pred_region
      %vm213 = vcmask 9216
      %214 = vst.msk [vmem:[%s5] sm:$0x3] %vm213, 0.0
      %215 = vst.msk [vmem:[%s6] sm:$0x3] %vm213, 0.0
    $region97: #{factorized_reduce.2} parent=1 // pred_fallthru
      _
    %v216 = vld [vmem:[#allocation2] sm:$0xff]
    %v217 = vld [vmem:[#allocation2 + $0x8] sm:$0xff]
    %v218 = vld [vmem:[#allocation2 + $0x10] sm:$0xff]
    %v219 = vld [vmem:[#allocation2 + $0x18] sm:$0xff]
    %v220 = vld [vmem:[#allocation2 + $0x20] sm:$0xff]
    %v221 = vld [vmem:[#allocation2 + $0x28] sm:$0xff]
    %v222 = vld [vmem:[#allocation2 + $0x30] sm:$0xff]
    %v223 = vld [vmem:[#allocation2 + $0x38] sm:$0xff]
    %v224 = vld [vmem:[#allocation2 + $0x40] sm:$0xff]
    %v225 = vld [vmem:[#allocation2 + $0x48] sm:$0xff]
    %v226 = vld [vmem:[#allocation2 + $0x50] sm:$0xff]
    %v227 = vld [vmem:[#allocation2 + $0x58] sm:$0xff]
    %v228 = vld [vmem:[#allocation2 + $0x60] sm:$0xff]
    %v229 = vld [vmem:[#allocation2 + $0x68] sm:$0xff]
    %v230 = vld [vmem:[#allocation2 + $0x70] sm:$0xff]
    %v231 = vld [vmem:[#allocation2 + $0x78] sm:$0xff]
    %v232 = vmax.f32 %v216, 0.0
    %v233 = vmax.f32 %v217, 0.0
    %v234 = vmax.f32 %v218, 0.0
    %v235 = vmax.f32 %v219, 0.0
    %v236 = vmax.f32 %v220, 0.0
    %v237 = vmax.f32 %v221, 0.0
    %v238 = vmax.f32 %v222, 0.0
    %v239 = vmax.f32 %v223, 0.0
    %v240 = vmax.f32 %v224, 0.0
    %v241 = vmax.f32 %v225, 0.0
    %v242 = vmax.f32 %v226, 0.0
    %v243 = vmax.f32 %v227, 0.0
    %v244 = vmax.f32 %v228, 0.0
    %v245 = vmax.f32 %v229, 0.0
    %v246 = vmax.f32 %v230, 0.0
    %v247 = vmax.f32 %v231, 0.0
    %v248 = vld [vmem:[#allocation3] sm:$0xff]
    %v249 = vld [vmem:[#allocation3 + $0x8] sm:$0xff]
    %v250 = vld [vmem:[#allocation3 + $0x10] sm:$0xff]
    %v251 = vld [vmem:[#allocation3 + $0x18] sm:$0xff]
    %v252 = vld [vmem:[#allocation3 + $0x20] sm:$0xff]
    %v253 = vld [vmem:[#allocation3 + $0x28] sm:$0xff]
    %v254 = vld [vmem:[#allocation3 + $0x30] sm:$0xff]
    %v255 = vld [vmem:[#allocation3 + $0x38] sm:$0xff]
    %v256 = vld [vmem:[#allocation3 + $0x40] sm:$0xff]
    %v257 = vld [vmem:[#allocation3 + $0x48] sm:$0xff]
    %v258 = vld [vmem:[#allocation3 + $0x50] sm:$0xff]
    %v259 = vld [vmem:[#allocation3 + $0x58] sm:$0xff]
    %v260 = vld [vmem:[#allocation3 + $0x60] sm:$0xff]
    %v261 = vld [vmem:[#allocation3 + $0x68] sm:$0xff]
    %v262 = vld [vmem:[#allocation3 + $0x70] sm:$0xff]
    %v263 = vld [vmem:[#allocation3 + $0x78] sm:$0xff]
    %v264 = vmax.f32 %v248, 0.0
    %v265 = vmax.f32 %v249, 0.0
    %v266 = vmax.f32 %v250, 0.0
    %v267 = vmax.f32 %v251, 0.0
    %v268 = vmax.f32 %v252, 0.0
    %v269 = vmax.f32 %v253, 0.0
    %v270 = vmax.f32 %v254, 0.0
    %v271 = vmax.f32 %v255, 0.0
    %v272 = vmax.f32 %v256, 0.0
    %v273 = vmax.f32 %v257, 0.0
    %v274 = vmax.f32 %v258, 0.0
    %v275 = vmax.f32 %v259, 0.0
    %v276 = vmax.f32 %v260, 0.0
    %v277 = vmax.f32 %v261, 0.0
    %v278 = vmax.f32 %v262, 0.0
    %v279 = vmax.f32 %v263, 0.0
    %v280 = vld [vmem:[%s2] sm:$0xff]
    %vm281 = vcmask 64512
    %v283 = vsel %vm281, %v232, 0
    %v286 = vsel %vm281, %v233, 0
    %v289 = vsel %vm281, %v234, 0
    %v292 = vsel %vm281, %v235, 0
    %v295 = vsel %vm281, %v236, 0
    %v298 = vsel %vm281, %v237, 0
    %v301 = vsel %vm281, %v238, 0
    %v304 = vsel %vm281, %v239, 0
    %v307 = vsel %vm281, %v240, 0
    %v310 = vsel %vm281, %v241, 0
    %v313 = vsel %vm281, %v242, 0
    %v316 = vsel %vm281, %v243, 0
    %v319 = vsel %vm281, %v244, 0
    %v322 = vsel %vm281, %v245, 0
    %v325 = vsel %vm281, %v246, 0
    %v328 = vsel %vm281, %v247, 0
    %330 = vmatprep.subr.mxu0 0.0
    %331 = vmatpush1.msra.mxu0 %v280
    %332 = vmatprep.subr.mxu0 0.0
    %333 = vmatpush1.msra.mxu0 0.0
    %334 = vmatprep.subr.mxu0 0.0
    %335 = vmatpush1.msra.mxu0 0.0
    %336 = vmatprep.subr.mxu0 0.0
    %337 = vmatpush1.msra.mxu0 0.0
    %338 = vmatprep.subr.mxu0 0.0
    %339 = vmatpush1.msra.mxu0 0.0
    %340 = vmatprep.subr.mxu0 0.0
    %341 = vmatpush1.msra.mxu0 0.0
    %342 = vmatprep.subr.mxu0 0.0
    %343 = vmatpush1.msra.mxu0 0.0
    %344 = vmatprep.subr.mxu0 0.0
    %345 = vmatpush1.msra.mxu0 0.0
    %346 = vmatprep.subr.mxu0 0.0
    %347 = vmatpush1.msra.mxu0 0.0
    %348 = vmatprep.subr.mxu0 0.0
    %349 = vmatpush1.msra.mxu0 0.0
    %350 = vmatprep.subr.mxu0 0.0
    %351 = vmatpush1.msra.mxu0 0.0
    %352 = vmatprep.subr.mxu0 0.0
    %353 = vmatpush1.msra.mxu0 0.0
    %354 = vmatprep.subr.mxu0 0.0
    %355 = vmatpush1.msra.mxu0 0.0
    %356 = vmatprep.subr.mxu0 0.0
    %357 = vmatpush1.msra.mxu0 0.0
    %358 = vmatprep.subr.mxu0 0.0
    %359 = vmatpush1.msra.mxu0 0.0
    %360 = vmatprep.subr.mxu0 0.0
    %361 = vmatpush1.msra.mxu0 0.0
    %362 = vmatprep.subr.mxu0 0.0
    %363 = vmatpush1.msra.mxu0 0.0
    %364 = vmatprep.subr.mxu0 0.0
    %365 = vmatpush1.msra.mxu0 0.0
    %366 = vmatprep.subr.mxu0 0.0
    %367 = vmatpush1.msra.mxu0 0.0
    %368 = vmatprep.subr.mxu0 0.0
    %369 = vmatpush1.msra.mxu0 0.0
    %370 = vmatprep.subr.mxu0 0.0
    %371 = vmatpush1.msra.mxu0 0.0
    %372 = vmatprep.subr.mxu0 0.0
    %373 = vmatpush1.msra.mxu0 0.0
    %374 = vmatprep.subr.mxu0 0.0
    %375 = vmatpush1.msra.mxu0 0.0
    %376 = vmatprep.subr.mxu0 0.0
    %377 = vmatpush1.msra.mxu0 0.0
    %378 = vmatprep.subr.mxu0 0.0
    %379 = vmatpush1.msra.mxu0 0.0
    %380 = vmatprep.subr.mxu0 0.0
    %381 = vmatpush1.msra.mxu0 0.0
    %382 = vmatprep.subr.mxu0 0.0
    %383 = vmatpush1.msra.mxu0 0.0
    %384 = vmatprep.subr.mxu0 0.0
    %385 = vmatpush1.msra.mxu0 0.0
    %386 = vmatprep.subr.mxu0 0.0
    %387 = vmatpush1.msra.mxu0 0.0
    %388 = vmatprep.subr.mxu0 0.0
    %389 = vmatpush1.msra.mxu0 0.0
    %390 = vmatprep.subr.mxu0 0.0
    %391 = vmatpush1.msra.mxu0 0.0
    %392 = vmatprep.subr.mxu0 0.0
    %393 = vmatpush1.msra.mxu0 0.0
    %394 = vmatprep.mubr.f32.mxu0 0.0
    %395 = vmatmul.mubr.f32.gmra.mrb[0].mxu0 %v283
    %v396 = vpop.f32.mrb[0].mxu0
    %v397 = vadd.f32 0.0, %v396
    %v398 = vpop.f32.mrb[0].mxu0
    %399 = vmatprep.mubr.f32.mxu0 0.0
    %400 = vmatmul.mubr.f32.gmra.mrb[0].mxu0 %v286
    %v401 = vpop.f32.mrb[0].mxu0
    %v402 = vadd.f32 0.0, %v401
    %v403 = vpop.f32.mrb[0].mxu0
    %404 = vmatprep.mubr.f32.mxu0 0.0
    %405 = vmatmul.mubr.f32.gmra.mrb[0].mxu0 %v289
    %v406 = vpop.f32.mrb[0].mxu0
    %v407 = vadd.f32 0.0, %v406
    %v408 = vpop.f32.mrb[0].mxu0
    %409 = vmatprep.mubr.f32.mxu0 0.0
    %410 = vmatmul.mubr.f32.gmra.mrb[0].mxu0 %v292
    %v411 = vpop.f32.mrb[0].mxu0
    %v412 = vadd.f32 0.0, %v411
    %v413 = vpop.f32.mrb[0].mxu0
    %414 = vmatprep.mubr.f32.mxu0 0.0
    %415 = vmatmul.mubr.f32.gmra.mrb[0].mxu0 %v295
    %v416 = vpop.f32.mrb[0].mxu0
    %v417 = vadd.f32 0.0, %v416
    %v418 = vpop.f32.mrb[0].mxu0
    %419 = vmatprep.mubr.f32.mxu0 0.0
    %420 = vmatmul.mubr.f32.gmra.mrb[0].mxu0 %v298
    %v421 = vpop.f32.mrb[0].mxu0
    %v422 = vadd.f32 0.0, %v421
    %v423 = vpop.f32.mrb[0].mxu0
    %424 = vmatprep.mubr.f32.mxu0 0.0
    %425 = vmatmul.mubr.f32.gmra.mrb[0].mxu0 %v301
    %v426 = vpop.f32.mrb[0].mxu0
    %v427 = vadd.f32 0.0, %v426
    %v428 = vpop.f32.mrb[0].mxu0
    %429 = vmatprep.mubr.f32.mxu0 0.0
    %430 = vmatmul.mubr.f32.gmra.mrb[0].mxu0 %v304
    %v431 = vpop.f32.mrb[0].mxu0
    %v432 = vadd.f32 0.0, %v431
    %v433 = vpop.f32.mrb[0].mxu0
    %434 = vmatprep.mubr.f32.mxu0 0.0
    %435 = vmatmul.mubr.f32.gmra.mrb[0].mxu0 %v307
    %v436 = vpop.f32.mrb[0].mxu0
    %v437 = vadd.f32 0.0, %v436
    %v438 = vpop.f32.mrb[0].mxu0
    %439 = vmatprep.mubr.f32.mxu0 0.0
    %440 = vmatmul.mubr.f32.gmra.mrb[0].mxu0 %v310
    %v441 = vpop.f32.mrb[0].mxu0
    %v442 = vadd.f32 0.0, %v441
    %v443 = vpop.f32.mrb[0].mxu0
    %444 = vmatprep.mubr.f32.mxu0 0.0
    %445 = vmatmul.mubr.f32.gmra.mrb[0].mxu0 %v313
    %v446 = vpop.f32.mrb[0].mxu0
    %v447 = vadd.f32 0.0, %v446
    %v448 = vpop.f32.mrb[0].mxu0
    %449 = vmatprep.mubr.f32.mxu0 0.0
    %450 = vmatmul.mubr.f32.gmra.mrb[0].mxu0 %v316
    %v451 = vpop.f32.mrb[0].mxu0
    %v452 = vadd.f32 0.0, %v451
    %v453 = vpop.f32.mrb[0].mxu0
    %454 = vmatprep.mubr.f32.mxu0 0.0
    %455 = vmatmul.mubr.f32.gmra.mrb[0].mxu0 %v319
    %v456 = vpop.f32.mrb[0].mxu0
    %v457 = vadd.f32 0.0, %v456
    %v458 = vpop.f32.mrb[0].mxu0
    %459 = vmatprep.mubr.f32.mxu0 0.0
    %460 = vmatmul.mubr.f32.gmra.mrb[0].mxu0 %v322
    %v461 = vpop.f32.mrb[0].mxu0
    %v462 = vadd.f32 0.0, %v461
    %v463 = vpop.f32.mrb[0].mxu0
    %464 = vmatprep.mubr.f32.mxu0 0.0
    %465 = vmatmul.mubr.f32.gmra.mrb[0].mxu0 %v325
    %v466 = vpop.f32.mrb[0].mxu0
    %v467 = vadd.f32 0.0, %v466
    %v468 = vpop.f32.mrb[0].mxu0
    %469 = vmatprep.mubr.f32.mxu0 0.0
    %470 = vmatmul.mubr.f32.gmra.mrb[0].mxu0 %v328
    %v471 = vpop.f32.mrb[0].mxu0
    %v472 = vadd.f32 0.0, %v471
    %v473 = vpop.f32.mrb[0].mxu0
    %474 = vdwg.mxu0
    %v475 = vld [vmem:[%s3] sm:$0xff]
    %v477 = vsel %vm281, %v264, 0
    %v480 = vsel %vm281, %v265, 0
    %v483 = vsel %vm281, %v266, 0
    %v486 = vsel %vm281, %v267, 0
    %v489 = vsel %vm281, %v268, 0
    %v492 = vsel %vm281, %v269, 0
    %v495 = vsel %vm281, %v270, 0
    %v498 = vsel %vm281, %v271, 0
    %v501 = vsel %vm281, %v272, 0
    %v504 = vsel %vm281, %v273, 0
    %v507 = vsel %vm281, %v274, 0
    %v510 = vsel %vm281, %v275, 0
    %v513 = vsel %vm281, %v276, 0
    %v516 = vsel %vm281, %v277, 0
    %v519 = vsel %vm281, %v278, 0
    %v522 = vsel %vm281, %v279, 0
    %524 = vmatprep.subr.mxu0 0.0
    %525 = vmatpush1.msra.mxu0 %v475
    %526 = vmatprep.subr.mxu0 0.0
    %527 = vmatpush1.msra.mxu0 0.0
    %528 = vmatprep.subr.mxu0 0.0
    %529 = vmatpush1.msra.mxu0 0.0
    %530 = vmatprep.subr.mxu0 0.0
    %531 = vmatpush1.msra.mxu0 0.0
    %532 = vmatprep.subr.mxu0 0.0
    %533 = vmatpush1.msra.mxu0 0.0
    %534 = vmatprep.subr.mxu0 0.0
    %535 = vmatpush1.msra.mxu0 0.0
    %536 = vmatprep.subr.mxu0 0.0
    %537 = vmatpush1.msra.mxu0 0.0
    %538 = vmatprep.subr.mxu0 0.0
    %539 = vmatpush1.msra.mxu0 0.0
    %540 = vmatprep.subr.mxu0 0.0
    %541 = vmatpush1.msra.mxu0 0.0
    %542 = vmatprep.subr.mxu0 0.0
    %543 = vmatpush1.msra.mxu0 0.0
    %544 = vmatprep.subr.mxu0 0.0
    %545 = vmatpush1.msra.mxu0 0.0
    %546 = vmatprep.subr.mxu0 0.0
    %547 = vmatpush1.msra.mxu0 0.0
    %548 = vmatprep.subr.mxu0 0.0
    %549 = vmatpush1.msra.mxu0 0.0
    %550 = vmatprep.subr.mxu0 0.0
    %551 = vmatpush1.msra.mxu0 0.0
    %552 = vmatprep.subr.mxu0 0.0
    %553 = vmatpush1.msra.mxu0 0.0
    %554 = vmatprep.subr.mxu0 0.0
    %555 = vmatpush1.msra.mxu0 0.0
    %556 = vmatprep.subr.mxu0 0.0
    %557 = vmatpush1.msra.mxu0 0.0
    %558 = vmatprep.subr.mxu0 0.0
    %559 = vmatpush1.msra.mxu0 0.0
    %560 = vmatprep.subr.mxu0 0.0
    %561 = vmatpush1.msra.mxu0 0.0
    %562 = vmatprep.subr.mxu0 0.0
    %563 = vmatpush1.msra.mxu0 0.0
    %564 = vmatprep.subr.mxu0 0.0
    %565 = vmatpush1.msra.mxu0 0.0
    %566 = vmatprep.subr.mxu0 0.0
    %567 = vmatpush1.msra.mxu0 0.0
    %568 = vmatprep.subr.mxu0 0.0
    %569 = vmatpush1.msra.mxu0 0.0
    %570 = vmatprep.subr.mxu0 0.0
    %571 = vmatpush1.msra.mxu0 0.0
    %572 = vmatprep.subr.mxu0 0.0
    %573 = vmatpush1.msra.mxu0 0.0
    %574 = vmatprep.subr.mxu0 0.0
    %575 = vmatpush1.msra.mxu0 0.0
    %576 = vmatprep.subr.mxu0 0.0
    %577 = vmatpush1.msra.mxu0 0.0
    %578 = vmatprep.subr.mxu0 0.0
    %579 = vmatpush1.msra.mxu0 0.0
    %580 = vmatprep.subr.mxu0 0.0
    %581 = vmatpush1.msra.mxu0 0.0
    %582 = vmatprep.subr.mxu0 0.0
    %583 = vmatpush1.msra.mxu0 0.0
    %584 = vmatprep.subr.mxu0 0.0
    %585 = vmatpush1.msra.mxu0 0.0
    %586 = vmatprep.subr.mxu0 0.0
    %587 = vmatpush1.msra.mxu0 0.0
    %588 = vmatprep.mubr.f32.mxu0 0.0
    %589 = vmatmul.mubr.f32.gmra.mrb[0].mxu0 %v477
    %v590 = vpop.f32.mrb[0].mxu0
    %v591 = vadd.f32 0.0, %v590
    %v592 = vpop.f32.mrb[0].mxu0
    %593 = vmatprep.mubr.f32.mxu0 0.0
    %594 = vmatmul.mubr.f32.gmra.mrb[0].mxu0 %v480
    %v595 = vpop.f32.mrb[0].mxu0
    %v596 = vadd.f32 0.0, %v595
    %v597 = vpop.f32.mrb[0].mxu0
    %598 = vmatprep.mubr.f32.mxu0 0.0
    %599 = vmatmul.mubr.f32.gmra.mrb[0].mxu0 %v483
    %v600 = vpop.f32.mrb[0].mxu0
    %v601 = vadd.f32 0.0, %v600
    %v602 = vpop.f32.mrb[0].mxu0
    %603 = vmatprep.mubr.f32.mxu0 0.0
    %604 = vmatmul.mubr.f32.gmra.mrb[0].mxu0 %v486
    %v605 = vpop.f32.mrb[0].mxu0
    %v606 = vadd.f32 0.0, %v605
    %v607 = vpop.f32.mrb[0].mxu0
    %608 = vmatprep.mubr.f32.mxu0 0.0
    %609 = vmatmul.mubr.f32.gmra.mrb[0].mxu0 %v489
    %v610 = vpop.f32.mrb[0].mxu0
    %v611 = vadd.f32 0.0, %v610
    %v612 = vpop.f32.mrb[0].mxu0
    %613 = vmatprep.mubr.f32.mxu0 0.0
    %614 = vmatmul.mubr.f32.gmra.mrb[0].mxu0 %v492
    %v615 = vpop.f32.mrb[0].mxu0
    %v616 = vadd.f32 0.0, %v615
    %v617 = vpop.f32.mrb[0].mxu0
    %618 = vmatprep.mubr.f32.mxu0 0.0
    %619 = vmatmul.mubr.f32.gmra.mrb[0].mxu0 %v495
    %v620 = vpop.f32.mrb[0].mxu0
    %v621 = vadd.f32 0.0, %v620
    %v622 = vpop.f32.mrb[0].mxu0
    %623 = vmatprep.mubr.f32.mxu0 0.0
    %624 = vmatmul.mubr.f32.gmra.mrb[0].mxu0 %v498
    %v625 = vpop.f32.mrb[0].mxu0
    %v626 = vadd.f32 0.0, %v625
    %v627 = vpop.f32.mrb[0].mxu0
    %628 = vmatprep.mubr.f32.mxu0 0.0
    %629 = vmatmul.mubr.f32.gmra.mrb[0].mxu0 %v501
    %v630 = vpop.f32.mrb[0].mxu0
    %v631 = vadd.f32 0.0, %v630
    %v632 = vpop.f32.mrb[0].mxu0
    %633 = vmatprep.mubr.f32.mxu0 0.0
    %634 = vmatmul.mubr.f32.gmra.mrb[0].mxu0 %v504
    %v635 = vpop.f32.mrb[0].mxu0
    %v636 = vadd.f32 0.0, %v635
    %v637 = vpop.f32.mrb[0].mxu0
    %638 = vmatprep.mubr.f32.mxu0 0.0
    %639 = vmatmul.mubr.f32.gmra.mrb[0].mxu0 %v507
    %v640 = vpop.f32.mrb[0].mxu0
    %v641 = vadd.f32 0.0, %v640
    %v642 = vpop.f32.mrb[0].mxu0
    %643 = vmatprep.mubr.f32.mxu0 0.0
    %644 = vmatmul.mubr.f32.gmra.mrb[0].mxu0 %v510
    %v645 = vpop.f32.mrb[0].mxu0
    %v646 = vadd.f32 0.0, %v645
    %v647 = vpop.f32.mrb[0].mxu0
    %648 = vmatprep.mubr.f32.mxu0 0.0
    %649 = vmatmul.mubr.f32.gmra.mrb[0].mxu0 %v513
    %v650 = vpop.f32.mrb[0].mxu0
    %v651 = vadd.f32 0.0, %v650
    %v652 = vpop.f32.mrb[0].mxu0
    %653 = vmatprep.mubr.f32.mxu0 0.0
    %654 = vmatmul.mubr.f32.gmra.mrb[0].mxu0 %v516
    %v655 = vpop.f32.mrb[0].mxu0
    %v656 = vadd.f32 0.0, %v655
    %v657 = vpop.f32.mrb[0].mxu0
    %658 = vmatprep.mubr.f32.mxu0 0.0
    %659 = vmatmul.mubr.f32.gmra.mrb[0].mxu0 %v519
    %v660 = vpop.f32.mrb[0].mxu0
    %v661 = vadd.f32 0.0, %v660
    %v662 = vpop.f32.mrb[0].mxu0
    %663 = vmatprep.mubr.f32.mxu0 0.0
    %664 = vmatmul.mubr.f32.gmra.mrb[0].mxu0 %v522
    %v665 = vpop.f32.mrb[0].mxu0
    %v666 = vadd.f32 0.0, %v665
    %v667 = vpop.f32.mrb[0].mxu0
    %668 = vdwg.mxu0
    %vm669 = vcmask 15360
    %670 = vst.msk [vmem:[%s4] sm:$0xff] %vm669, %v397
    %671 = vst.msk [vmem:[%s4 + $0x8] sm:$0xff] %vm669, %v402
    %672 = vst.msk [vmem:[%s4 + $0x10] sm:$0xff] %vm669, %v407
    %673 = vst.msk [vmem:[%s4 + $0x18] sm:$0xff] %vm669, %v412
    %674 = vst.msk [vmem:[%s4 + $0x20] sm:$0xff] %vm669, %v417
    %675 = vst.msk [vmem:[%s4 + $0x28] sm:$0xff] %vm669, %v422
    %676 = vst.msk [vmem:[%s4 + $0x30] sm:$0xff] %vm669, %v427
    %677 = vst.msk [vmem:[%s4 + $0x38] sm:$0xff] %vm669, %v432
    %678 = vst.msk [vmem:[%s4 + $0x40] sm:$0xff] %vm669, %v437
    %679 = vst.msk [vmem:[%s4 + $0x48] sm:$0xff] %vm669, %v442
    %680 = vst.msk [vmem:[%s4 + $0x50] sm:$0xff] %vm669, %v447
    %681 = vst.msk [vmem:[%s4 + $0x58] sm:$0xff] %vm669, %v452
    %682 = vst.msk [vmem:[%s4 + $0x60] sm:$0xff] %vm669, %v457
    %683 = vst.msk [vmem:[%s4 + $0x68] sm:$0xff] %vm669, %v462
    %684 = vst.msk [vmem:[%s4 + $0x70] sm:$0xff] %vm669, %v467
    %685 = vst.msk [vmem:[%s4 + $0x78] sm:$0xff] %vm669, %v472
    %s686 = scalar_lea.vmem %s4, 128
    %687 = vst.msk [vmem:[%s686] sm:$0xff] %vm669, %v591
    %688 = vst.msk [vmem:[%s686 + $0x8] sm:$0xff] %vm669, %v596
    %689 = vst.msk [vmem:[%s686 + $0x10] sm:$0xff] %vm669, %v601
    %690 = vst.msk [vmem:[%s686 + $0x18] sm:$0xff] %vm669, %v606
    %691 = vst.msk [vmem:[%s686 + $0x20] sm:$0xff] %vm669, %v611
    %692 = vst.msk [vmem:[%s686 + $0x28] sm:$0xff] %vm669, %v616
    %693 = vst.msk [vmem:[%s686 + $0x30] sm:$0xff] %vm669, %v621
    %694 = vst.msk [vmem:[%s686 + $0x38] sm:$0xff] %vm669, %v626
    %695 = vst.msk [vmem:[%s686 + $0x40] sm:$0xff] %vm669, %v631
    %696 = vst.msk [vmem:[%s686 + $0x48] sm:$0xff] %vm669, %v636
    %697 = vst.msk [vmem:[%s686 + $0x50] sm:$0xff] %vm669, %v641
    %698 = vst.msk [vmem:[%s686 + $0x58] sm:$0xff] %vm669, %v646
    %699 = vst.msk [vmem:[%s686 + $0x60] sm:$0xff] %vm669, %v651
    %700 = vst.msk [vmem:[%s686 + $0x68] sm:$0xff] %vm669, %v656
    %701 = vst.msk [vmem:[%s686 + $0x70] sm:$0xff] %vm669, %v661
    %702 = vst.msk [vmem:[%s686 + $0x78] sm:$0xff] %vm669, %v666
    %v703 = vld [vmem:[%s5] sm:$0x3]
    %v704 = vsel %vm669, %v397, 0.0
    %v705 = vsel %vm669, %v402, 0.0
    %v706 = vadd.f32 %v704, %v705
    %v707 = vsel %vm669, %v407, 0.0
    %v708 = vadd.f32 %v706, %v707
    %v709 = vsel %vm669, %v412, 0.0
    %v710 = vadd.f32 %v708, %v709
    %v711 = vsel %vm669, %v417, 0.0
    %v712 = vadd.f32 %v710, %v711
    %v713 = vsel %vm669, %v422, 0.0
    %v714 = vadd.f32 %v712, %v713
    %v715 = vsel %vm669, %v427, 0.0
    %v716 = vadd.f32 %v714, %v715
    %v717 = vsel %vm669, %v432, 0.0
    %v718 = vadd.f32 %v716, %v717
    %v719 = vsel %vm669, %v437, 0.0
    %v720 = vadd.f32 %v718, %v719
    %v721 = vsel %vm669, %v442, 0.0
    %v722 = vadd.f32 %v720, %v721
    %v723 = vsel %vm669, %v447, 0.0
    %v724 = vadd.f32 %v722, %v723
    %v725 = vsel %vm669, %v452, 0.0
    %v726 = vadd.f32 %v724, %v725
    %v727 = vsel %vm669, %v457, 0.0
    %v728 = vadd.f32 %v726, %v727
    %v729 = vsel %vm669, %v462, 0.0
    %v730 = vadd.f32 %v728, %v729
    %v731 = vsel %vm669, %v467, 0.0
    %v732 = vadd.f32 %v730, %v731
    %v733 = vsel %vm669, %v472, 0.0
    %v734 = vadd.f32 %v732, %v733
    %v735 = vrot.slane %v734, 4
    %v736 = vadd.f32 %v734, %v735
    %v737 = vrot.slane %v736, 2
    %v738 = vadd.f32 %v736, %v737
    %v739 = vrot.slane %v738, 1
    %v740 = vadd.f32 %v738, %v739
    %v741 = vsel %vm669, %v591, 0.0
    %v742 = vsel %vm669, %v596, 0.0
    %v743 = vadd.f32 %v741, %v742
    %v744 = vsel %vm669, %v601, 0.0
    %v745 = vadd.f32 %v743, %v744
    %v746 = vsel %vm669, %v606, 0.0
    %v747 = vadd.f32 %v745, %v746
    %v748 = vsel %vm669, %v611, 0.0
    %v749 = vadd.f32 %v747, %v748
    %v750 = vsel %vm669, %v616, 0.0
    %v751 = vadd.f32 %v749, %v750
    %v752 = vsel %vm669, %v621, 0.0
    %v753 = vadd.f32 %v751, %v752
    %v754 = vsel %vm669, %v626, 0.0
    %v755 = vadd.f32 %v753, %v754
    %v756 = vsel %vm669, %v631, 0.0
    %v757 = vadd.f32 %v755, %v756
    %v758 = vsel %vm669, %v636, 0.0
    %v759 = vadd.f32 %v757, %v758
    %v760 = vsel %vm669, %v641, 0.0
    %v761 = vadd.f32 %v759, %v760
    %v762 = vsel %vm669, %v646, 0.0
    %v763 = vadd.f32 %v761, %v762
    %v764 = vsel %vm669, %v651, 0.0
    %v765 = vadd.f32 %v763, %v764
    %v766 = vsel %vm669, %v656, 0.0
    %v767 = vadd.f32 %v765, %v766
    %v768 = vsel %vm669, %v661, 0.0
    %v769 = vadd.f32 %v767, %v768
    %v770 = vsel %vm669, %v666, 0.0
    %v771 = vadd.f32 %v769, %v770
    %v772 = vrot.slane %v771, 4
    %v773 = vadd.f32 %v771, %v772
    %v774 = vrot.slane %v773, 2
    %v775 = vadd.f32 %v773, %v774
    %v776 = vrot.slane %v775, 1
    %v777 = vadd.f32 %v775, %v776
    %vm778 = vcmask 1040384
    %v779 = vsel %vm778, %v740, %v777
    %v780 = vadd.f32 %v703, %v779
    %vm781 = vcmask 9216
    %782 = vst.msk [vmem:[%s5] sm:$0x3] %vm781, %v780
    %v783 = vld [vmem:[%s6] sm:$0x3]
    %v784 = vmul.f32 %v397, %v397
    %v785 = vmul.f32 %v402, %v402
    %v786 = vmul.f32 %v407, %v407
    %v787 = vmul.f32 %v412, %v412
    %v788 = vmul.f32 %v417, %v417
    %v789 = vmul.f32 %v422, %v422
    %v790 = vmul.f32 %v427, %v427
    %v791 = vmul.f32 %v432, %v432
    %v792 = vmul.f32 %v437, %v437
    %v793 = vmul.f32 %v442, %v442
    %v794 = vmul.f32 %v447, %v447
    %v795 = vmul.f32 %v452, %v452
    %v796 = vmul.f32 %v457, %v457
    %v797 = vmul.f32 %v462, %v462
    %v798 = vmul.f32 %v467, %v467
    %v799 = vmul.f32 %v472, %v472
    %v800 = vsel %vm669, %v784, 0.0
    %v801 = vsel %vm669, %v785, 0.0
    %v802 = vadd.f32 %v800, %v801
    %v803 = vsel %vm669, %v786, 0.0
    %v804 = vadd.f32 %v802, %v803
    %v805 = vsel %vm669, %v787, 0.0
    %v806 = vadd.f32 %v804, %v805
    %v807 = vsel %vm669, %v788, 0.0
    %v808 = vadd.f32 %v806, %v807
    %v809 = vsel %vm669, %v789, 0.0
    %v810 = vadd.f32 %v808, %v809
    %v811 = vsel %vm669, %v790, 0.0
    %v812 = vadd.f32 %v810, %v811
    %v813 = vsel %vm669, %v791, 0.0
    %v814 = vadd.f32 %v812, %v813
    %v815 = vsel %vm669, %v792, 0.0
    %v816 = vadd.f32 %v814, %v815
    %v817 = vsel %vm669, %v793, 0.0
    %v818 = vadd.f32 %v816, %v817
    %v819 = vsel %vm669, %v794, 0.0
    %v820 = vadd.f32 %v818, %v819
    %v821 = vsel %vm669, %v795, 0.0
    %v822 = vadd.f32 %v820, %v821
    %v823 = vsel %vm669, %v796, 0.0
    %v824 = vadd.f32 %v822, %v823
    %v825 = vsel %vm669, %v797, 0.0
    %v826 = vadd.f32 %v824, %v825
    %v827 = vsel %vm669, %v798, 0.0
    %v828 = vadd.f32 %v826, %v827
    %v829 = vsel %vm669, %v799, 0.0
    %v830 = vadd.f32 %v828, %v829
    %v831 = vrot.slane %v830, 4
    %v832 = vadd.f32 %v830, %v831
    %v833 = vrot.slane %v832, 2
    %v834 = vadd.f32 %v832, %v833
    %v835 = vrot.slane %v834, 1
    %v836 = vadd.f32 %v834, %v835
    %v837 = vmul.f32 %v591, %v591
    %v838 = vmul.f32 %v596, %v596
    %v839 = vmul.f32 %v601, %v601
    %v840 = vmul.f32 %v606, %v606
    %v841 = vmul.f32 %v611, %v611
    %v842 = vmul.f32 %v616, %v616
    %v843 = vmul.f32 %v621, %v621
    %v844 = vmul.f32 %v626, %v626
    %v845 = vmul.f32 %v631, %v631
    %v846 = vmul.f32 %v636, %v636
    %v847 = vmul.f32 %v641, %v641
    %v848 = vmul.f32 %v646, %v646
    %v849 = vmul.f32 %v651, %v651
    %v850 = vmul.f32 %v656, %v656
    %v851 = vmul.f32 %v661, %v661
    %v852 = vmul.f32 %v666, %v666
    %v853 = vsel %vm669, %v837, 0.0
    %v854 = vsel %vm669, %v838, 0.0
    %v855 = vadd.f32 %v853, %v854
    %v856 = vsel %vm669, %v839, 0.0
    %v857 = vadd.f32 %v855, %v856
    %v858 = vsel %vm669, %v840, 0.0
    %v859 = vadd.f32 %v857, %v858
    %v860 = vsel %vm669, %v841, 0.0
    %v861 = vadd.f32 %v859, %v860
    %v862 = vsel %vm669, %v842, 0.0
    %v863 = vadd.f32 %v861, %v862
    %v864 = vsel %vm669, %v843, 0.0
    %v865 = vadd.f32 %v863, %v864
    %v866 = vsel %vm669, %v844, 0.0
    %v867 = vadd.f32 %v865, %v866
    %v868 = vsel %vm669, %v845, 0.0
    %v869 = vadd.f32 %v867, %v868
    %v870 = vsel %vm669, %v846, 0.0
    %v871 = vadd.f32 %v869, %v870
    %v872 = vsel %vm669, %v847, 0.0
    %v873 = vadd.f32 %v871, %v872
    %v874 = vsel %vm669, %v848, 0.0
    %v875 = vadd.f32 %v873, %v874
    %v876 = vsel %vm669, %v849, 0.0
    %v877 = vadd.f32 %v875, %v876
    %v878 = vsel %vm669, %v850, 0.0
    %v879 = vadd.f32 %v877, %v878
    %v880 = vsel %vm669, %v851, 0.0
    %v881 = vadd.f32 %v879, %v880
    %v882 = vsel %vm669, %v852, 0.0
    %v883 = vadd.f32 %v881, %v882
    %v884 = vrot.slane %v883, 4
    %v885 = vadd.f32 %v883, %v884
    %v886 = vrot.slane %v885, 2
    %v887 = vadd.f32 %v885, %v886
    %v888 = vrot.slane %v887, 1
    %v889 = vadd.f32 %v887, %v888
    %v890 = vsel %vm778, %v836, %v889
    %v891 = vadd.f32 %v783, %v890
    %892 = vst.msk [vmem:[%s6] sm:$0x3] %vm781, %v891
    // Predicated region
    $region98: #{factorized_reduce.2} parent=1 // pred_check
      _
    $region99: #{factorized_reduce.2} parent=1 // pred_check_branch
      %894 = sbr.rel (0) target = $region101
    $region100: #{factorized_reduce.2} parent=1 // pred_region
      _
    $region101: #{factorized_reduce.2} parent=1 // pred_fallthru
      _
    // Predicated region
    $region102: #{factorized_reduce.2} parent=1 // pred_check
      _
    $region103: #{factorized_reduce.2} parent=1 // pred_check_branch
      %896 = sbr.rel (0) target = $region105
    $region104: #{factorized_reduce.2} parent=1 // pred_region
      _
    $region105: #{factorized_reduce.2} parent=1 // pred_fallthru
      _
    // Predicated region
    $region106: #{factorized_reduce.2} parent=1 // pred_check
      _
    $region107: #{factorized_reduce.2} parent=1 // pred_check_branch
      %898 = sbr.rel (0) target = $region109
    $region108: #{factorized_reduce.2} parent=1 // pred_region
      _
    $region109: #{factorized_reduce.2} parent=1 // pred_fallthru
      _
    // Predicated region
    $region110: #{factorized_reduce.2} parent=1 // pred_check
      _
    $region111: #{factorized_reduce.2} parent=1 // pred_check_branch
      %900 = sbr.rel (0) target = $region113
    $region112: #{factorized_reduce.2} parent=1 // pred_region
      _
    $region113: #{factorized_reduce.2} parent=1 // pred_fallthru
      _
    // Predicated region
    $region114: #{factorized_reduce.2} parent=1 // pred_check
      _
    $region115: #{factorized_reduce.2} parent=1 // pred_check_branch
      %902 = sbr.rel (0) target = $region117
    $region116: #{factorized_reduce.2} parent=1 // pred_region
      _
    $region117: #{factorized_reduce.2} parent=1 // pred_fallthru
      _
    // Predicated region
    $region118: #{factorized_reduce.2} parent=1 // pred_check
      _
    $region119: #{factorized_reduce.2} parent=1 // pred_check_branch
      %904 = sbr.rel (0) target = $region121
    $region120: #{factorized_reduce.2} parent=1 // pred_region
      _
    $region121: #{factorized_reduce.2} parent=1 // pred_fallthru
      _

</llo_original>
